<compile_context>
chip_gen: v7x
topology: tpu7x:2x2x1
jax: 0.10.0
libtpu: 0.0.40
codegen_flags: <defaults>
</compile_context>

<pallas_src>
import math

import jax
import jax.numpy as jnp
from jax.experimental import pallas as pl
from jax.experimental.pallas import tpu as pltpu

IN_DIM = 68 * 9          # 612
H1, H2, H3 = 512, 256, 128
OUT_DIM = 106 * 3        # 318


def _round_up(n, m):
    return (n + m - 1) // m * m


def _cdiv(a, b):
    return (a + b - 1) // b


def _mlp_kernel(x_ref,
                w1_ref, b1_ref,
                w2_ref, b2_ref,
                w3_ref, b3_ref,
                w4_ref, b4_ref,
                o_ref):
    """Fused fc1..fc4, ReLU after every layer (incl. the last, per the module)."""

    def layer(h_bf16, w_ref, b_ref):
        # bf16 MXU matmul, f32 accumulation; bias + ReLU stay f32 on the VPU.
        acc = jnp.dot(h_bf16, w_ref[...], preferred_element_type=jnp.float32)
        return jnp.maximum(acc + b_ref[...], 0.0)

    # Cast the activation tile to bf16 in-kernel (no wrapper pad/cast pass);
    # downcast each inter-layer activation to bf16 to halve VMEM staging.
    h = layer(x_ref[...].astype(jnp.bfloat16), w1_ref, b1_ref)
    h = layer(h.astype(jnp.bfloat16), w2_ref, b2_ref)
    h = layer(h.astype(jnp.bfloat16), w3_ref, b3_ref)
    h = layer(h.astype(jnp.bfloat16), w4_ref, b4_ref)
    o_ref[...] = h.astype(o_ref.dtype)


def prepare_params(params):
    """One-time parameter prep (do NOT redo per forward call).

    `params` is [(w, b), ...] with weights in (in_features, out_features)
    layout (i.e. PyTorch's weight transposed).  Weights -> bf16 for the MXU,
    biases -> lane-aligned (1, H) f32 for a pure lane-wise VPU add.
    """
    (w1, b1), (w2, b2), (w3, b3), (w4, b4) = params
    return (
        w1.astype(jnp.bfloat16), b1.reshape(1, H1).astype(jnp.float32),
        w2.astype(jnp.bfloat16), b2.reshape(1, H2).astype(jnp.float32),
        w3.astype(jnp.bfloat16), b3.reshape(1, H3).astype(jnp.float32),
        w4.astype(jnp.bfloat16), b4.reshape(1, OUT_DIM).astype(jnp.float32),
    )


def _choose_tb(B, tb_max, min_grid):
    """Pick a batch tile: multiple of 8, balanced across >= min_grid steps."""
    if B <= 8:
        # Tiny batch: a single block equal to the full batch dim (always legal).
        return B
    n_steps = max(min_grid, _cdiv(B, tb_max))
    tb = min(tb_max, _round_up(_cdiv(B, n_steps), 8))
    return max(tb, 8)


def mlp_forward(x, prepared_params, *, tb_max=1024, min_grid=2,
                out_dtype=jnp.float32):
    """x: (..., 68, 9) or (B, 612); returns (B, 318) in `out_dtype`.

    `prepared_params` must come from `prepare_params` (bf16 weights, (1,H) f32
    biases).  Set out_dtype=jnp.bfloat16 to halve output store bytes if the
    consumer tolerates it.
    """
    (w1, b1, w2, b2, w3, b3, w4, b4) = prepared_params

    x2d = x.reshape(-1, IN_DIM)
    B = x2d.shape[0]

    TB = _choose_tb(B, tb_max, min_grid)
    grid = (_cdiv(B, TB),)   # ragged last block: reads padded, writes masked

    def resident(shape):
        # Constant index_map -> tile stays pinned in VMEM across grid steps.
        return pl.BlockSpec(shape, lambda i: (0, 0))

    flops = 2 * B * (IN_DIM * H1 + H1 * H2 + H2 * H3 + H3 * OUT_DIM)
    bytes_accessed = (
        x2d.size * x2d.dtype.itemsize
        + B * OUT_DIM * jnp.dtype(out_dtype).itemsize
        + sum(a.size * a.dtype.itemsize
              for a in (w1, b1, w2, b2, w3, b3, w4, b4))
    )

    out = pl.pallas_call(
        _mlp_kernel,
        out_shape=jax.ShapeDtypeStruct((B, OUT_DIM), out_dtype),
        grid_spec=pltpu.PrefetchScalarGridSpec(
            num_scalar_prefetch=0,
            grid=grid,
            in_specs=[
                # Activations: tiled over batch, full 612-wide rows (no pad).
                # (If DMA shows exposed after raising TB, add
                #  pipeline_mode=pl.Buffered(3) here and on out_specs.)
                pl.BlockSpec((TB, IN_DIM), lambda i: (i, 0)),
                resident((IN_DIM, H1)), resident((1, H1)),
                resident((H1, H2)),     resident((1, H2)),
                resident((H2, H3)),     resident((1, H3)),
                resident((H3, OUT_DIM)), resident((1, OUT_DIM)),
            ],
            out_specs=pl.BlockSpec((TB, OUT_DIM), lambda i: (i, 0)),
        ),
        compiler_params=pltpu.CompilerParams(
            dimension_semantics=("parallel",),  # megacore sharding on v7x
        ),
        cost_estimate=pl.CostEstimate(
            flops=flops, transcendentals=0, bytes_accessed=bytes_accessed),
    )(x2d, w1, b1, w2, b2, w3, b3, w4, b4)

    return out


def init_params(key):
    """Deterministic init mirroring nn.Linear default (uniform +/- 1/sqrt(fan_in)).
    Weights stored transposed relative to PyTorch: (in_features, out_features)."""
    dims = [(IN_DIM, H1), (H1, H2), (H2, H3), (H3, OUT_DIM)]
    params = []
    for i, (fan_in, fan_out) in enumerate(dims):
        kw, kb = jax.random.split(jax.random.fold_in(key, i))
        bound = 1.0 / math.sqrt(fan_in)
        w = jax.random.uniform(kw, (fan_in, fan_out), jnp.float32, -bound, bound)
        b = jax.random.uniform(kb, (fan_out,), jnp.float32, -bound, bound)
        params.append((w, b))
    return params


def _reference(x, params):
    """Pure-JAX reference mirroring the kernel's numerics (bf16 MXU inputs,
    f32 accumulation, f32 bias + ReLU)."""
    h = x.reshape(-1, IN_DIM).astype(jnp.float32)
    for w, b in params:
        h = jnp.dot(h.astype(jnp.bfloat16), w.astype(jnp.bfloat16),
                    preferred_element_type=jnp.float32)
        h = jnp.maximum(h + b.astype(jnp.float32), 0.0)
    return h


if __name__ == "__main__":
    key = jax.random.PRNGKey(0)
    kx, kp = jax.random.split(key)

    # Input consistent with the module's reshape: (batch, 68, 9)
    x = jax.random.normal(kx, (2, 68, 9), jnp.float32)
    params = init_params(kp)
    prepared = prepare_params(params)   # one-time bf16 cast / bias reshape

    out = mlp_forward(x, prepared)
    out = jax.block_until_ready(out)

    ref = _reference(x, params)
    assert out.shape == (2, OUT_DIM), out.shape
    assert jnp.allclose(out, ref, atol=2e-2, rtol=2e-2), "mismatch vs reference"

    print("KERNEL_OK")
</pallas_src>

<mosaic_0001>
module attributes {stable_mosaic.version = 11 : i64} {
  func.func @_mlp_kernel(%arg0: i32, %arg1: memref<2x612xf32, #tpu.memory_space<vmem>>, %arg2: memref<612x512xbf16, #tpu.memory_space<vmem>>, %arg3: memref<1x512xf32, #tpu.memory_space<vmem>>, %arg4: memref<512x256xbf16, #tpu.memory_space<vmem>>, %arg5: memref<1x256xf32, #tpu.memory_space<vmem>>, %arg6: memref<256x128xbf16, #tpu.memory_space<vmem>>, %arg7: memref<1x128xf32, #tpu.memory_space<vmem>>, %arg8: memref<128x318xbf16, #tpu.memory_space<vmem>>, %arg9: memref<1x318xf32, #tpu.memory_space<vmem>>, %arg10: memref<2x318xf32, #tpu.memory_space<vmem>>) attributes {dimension_semantics = [#tpu.dimension_semantics<parallel>], iteration_bounds = array<i64: 1>, scalar_prefetch = 0 : i64, scratch_operands = 0 : i64, tpu.core_type = #tpu.core_type<tc>, window_params = [{transform_indices = @transform_0, window_bounds = array<i64: 2, 612>}, {pipeline_mode = #tpu.pipeline_mode<synchronous>, transform_indices = @transform_1, window_bounds = array<i64: 612, 512>}, {pipeline_mode = #tpu.pipeline_mode<synchronous>, transform_indices = @transform_2, window_bounds = array<i64: 1, 512>}, {pipeline_mode = #tpu.pipeline_mode<synchronous>, transform_indices = @transform_3, window_bounds = array<i64: 512, 256>}, {pipeline_mode = #tpu.pipeline_mode<synchronous>, transform_indices = @transform_4, window_bounds = array<i64: 1, 256>}, {pipeline_mode = #tpu.pipeline_mode<synchronous>, transform_indices = @transform_5, window_bounds = array<i64: 256, 128>}, {pipeline_mode = #tpu.pipeline_mode<synchronous>, transform_indices = @transform_6, window_bounds = array<i64: 1, 128>}, {pipeline_mode = #tpu.pipeline_mode<synchronous>, transform_indices = @transform_7, window_bounds = array<i64: 128, 318>}, {pipeline_mode = #tpu.pipeline_mode<synchronous>, transform_indices = @transform_8, window_bounds = array<i64: 1, 318>}, {transform_indices = @transform_9, window_bounds = array<i64: 2, 318>}]} {
    %c0 = arith.constant 0 : index
    %c0_0 = arith.constant 0 : index
    %0 = vector.load %arg1[%c0, %c0_0] : memref<2x612xf32, #tpu.memory_space<vmem>>, vector<2x612xf32>
    %1 = arith.truncf %0 : vector<2x612xf32> to vector<2x612xbf16>
    %c0_1 = arith.constant 0 : index
    %c0_2 = arith.constant 0 : index
    %2 = vector.load %arg2[%c0_1, %c0_2] : memref<612x512xbf16, #tpu.memory_space<vmem>>, vector<612x512xbf16>
    %cst = arith.constant dense<0.000000e+00> : vector<2x512xf32>
    %3 = tpu.matmul %1, %2, %cst {dimension_numbers = #tpu.dot_dimension_numbers<[1], [0], [0], [1], [0, 0, 1, 1], [], []>} : vector<2x612xbf16>, vector<612x512xbf16>, vector<2x512xf32> -> vector<2x512xf32>
    %c0_3 = arith.constant 0 : index
    %c0_4 = arith.constant 0 : index
    %4 = vector.load %arg3[%c0_3, %c0_4] : memref<1x512xf32, #tpu.memory_space<vmem>>, vector<1x512xf32>
    %5 = vector.broadcast %4 : vector<1x512xf32> to vector<2x512xf32>
    %6 = arith.addf %3, %5 : vector<2x512xf32>
    %cst_5 = arith.constant 0.000000e+00 : f32
    %7 = vector.broadcast %cst_5 : f32 to vector<2x512xf32>
    %8 = arith.maximumf %6, %7 : vector<2x512xf32>
    %9 = arith.truncf %8 : vector<2x512xf32> to vector<2x512xbf16>
    %c0_6 = arith.constant 0 : index
    %c0_7 = arith.constant 0 : index
    %10 = vector.load %arg4[%c0_6, %c0_7] : memref<512x256xbf16, #tpu.memory_space<vmem>>, vector<512x256xbf16>
    %cst_8 = arith.constant dense<0.000000e+00> : vector<2x256xf32>
    %11 = tpu.matmul %9, %10, %cst_8 {dimension_numbers = #tpu.dot_dimension_numbers<[1], [0], [0], [1], [0, 0, 1, 1], [], []>} : vector<2x512xbf16>, vector<512x256xbf16>, vector<2x256xf32> -> vector<2x256xf32>
    %c0_9 = arith.constant 0 : index
    %c0_10 = arith.constant 0 : index
    %12 = vector.load %arg5[%c0_9, %c0_10] : memref<1x256xf32, #tpu.memory_space<vmem>>, vector<1x256xf32>
    %13 = vector.broadcast %12 : vector<1x256xf32> to vector<2x256xf32>
    %14 = arith.addf %11, %13 : vector<2x256xf32>
    %cst_11 = arith.constant 0.000000e+00 : f32
    %15 = vector.broadcast %cst_11 : f32 to vector<2x256xf32>
    %16 = arith.maximumf %14, %15 : vector<2x256xf32>
    %17 = arith.truncf %16 : vector<2x256xf32> to vector<2x256xbf16>
    %c0_12 = arith.constant 0 : index
    %c0_13 = arith.constant 0 : index
    %18 = vector.load %arg6[%c0_12, %c0_13] : memref<256x128xbf16, #tpu.memory_space<vmem>>, vector<256x128xbf16>
    %cst_14 = arith.constant dense<0.000000e+00> : vector<2x128xf32>
    %19 = tpu.matmul %17, %18, %cst_14 {dimension_numbers = #tpu.dot_dimension_numbers<[1], [0], [0], [1], [0, 0, 1, 1], [], []>} : vector<2x256xbf16>, vector<256x128xbf16>, vector<2x128xf32> -> vector<2x128xf32>
    %c0_15 = arith.constant 0 : index
    %c0_16 = arith.constant 0 : index
    %20 = vector.load %arg7[%c0_15, %c0_16] : memref<1x128xf32, #tpu.memory_space<vmem>>, vector<1x128xf32>
    %21 = vector.broadcast %20 : vector<1x128xf32> to vector<2x128xf32>
    %22 = arith.addf %19, %21 : vector<2x128xf32>
    %cst_17 = arith.constant 0.000000e+00 : f32
    %23 = vector.broadcast %cst_17 : f32 to vector<2x128xf32>
    %24 = arith.maximumf %22, %23 : vector<2x128xf32>
    %25 = arith.truncf %24 : vector<2x128xf32> to vector<2x128xbf16>
    %c0_18 = arith.constant 0 : index
    %c0_19 = arith.constant 0 : index
    %26 = vector.load %arg8[%c0_18, %c0_19] : memref<128x318xbf16, #tpu.memory_space<vmem>>, vector<128x318xbf16>
    %cst_20 = arith.constant dense<0.000000e+00> : vector<2x318xf32>
    %27 = tpu.matmul %25, %26, %cst_20 {dimension_numbers = #tpu.dot_dimension_numbers<[1], [0], [0], [1], [0, 0, 1, 1], [], []>} : vector<2x128xbf16>, vector<128x318xbf16>, vector<2x318xf32> -> vector<2x318xf32>
    %c0_21 = arith.constant 0 : index
    %c0_22 = arith.constant 0 : index
    %28 = vector.load %arg9[%c0_21, %c0_22] : memref<1x318xf32, #tpu.memory_space<vmem>>, vector<1x318xf32>
    %29 = vector.broadcast %28 : vector<1x318xf32> to vector<2x318xf32>
    %30 = arith.addf %27, %29 : vector<2x318xf32>
    %cst_23 = arith.constant 0.000000e+00 : f32
    %31 = vector.broadcast %cst_23 : f32 to vector<2x318xf32>
    %32 = arith.maximumf %30, %31 : vector<2x318xf32>
    %c0_24 = arith.constant 0 : index
    %c0_25 = arith.constant 0 : index
    %33 = vector.load %arg10[%c0_24, %c0_25] : memref<2x318xf32, #tpu.memory_space<vmem>>, vector<2x318xf32>
    tpu.vector_store %arg10[%c0_24, %c0_25], %32 {strides = array<i32>} : memref<2x318xf32, #tpu.memory_space<vmem>>, vector<2x318xf32>,
    return
  }
  func.func @transform_0(%arg0: i32) -> (i32, i32) {
    %c0_i32 = arith.constant 0 : i32
    %c0_i32_0 = arith.constant 0 : i32
    return %arg0, %c0_i32 : i32, i32
  }
  func.func @transform_1(%arg0: i32) -> (i32, i32) {
    %c0_i32 = arith.constant 0 : i32
    %c0_i32_0 = arith.constant 0 : i32
    %c0_i32_1 = arith.constant 0 : i32
    return %c0_i32, %c0_i32_0 : i32, i32
  }
  func.func @transform_2(%arg0: i32) -> (i32, i32) {
    %c0_i32 = arith.constant 0 : i32
    %c0_i32_0 = arith.constant 0 : i32
    %c0_i32_1 = arith.constant 0 : i32
    return %c0_i32, %c0_i32_0 : i32, i32
  }
  func.func @transform_3(%arg0: i32) -> (i32, i32) {
    %c0_i32 = arith.constant 0 : i32
    %c0_i32_0 = arith.constant 0 : i32
    %c0_i32_1 = arith.constant 0 : i32
    return %c0_i32, %c0_i32_0 : i32, i32
  }
  func.func @transform_4(%arg0: i32) -> (i32, i32) {
    %c0_i32 = arith.constant 0 : i32
    %c0_i32_0 = arith.constant 0 : i32
    %c0_i32_1 = arith.constant 0 : i32
    return %c0_i32, %c0_i32_0 : i32, i32
  }
  func.func @transform_5(%arg0: i32) -> (i32, i32) {
    %c0_i32 = arith.constant 0 : i32
    %c0_i32_0 = arith.constant 0 : i32
    %c0_i32_1 = arith.constant 0 : i32
    return %c0_i32, %c0_i32_0 : i32, i32
  }
  func.func @transform_6(%arg0: i32) -> (i32, i32) {
    %c0_i32 = arith.constant 0 : i32
    %c0_i32_0 = arith.constant 0 : i32
    %c0_i32_1 = arith.constant 0 : i32
    return %c0_i32, %c0_i32_0 : i32, i32
  }
  func.func @transform_7(%arg0: i32) -> (i32, i32) {
    %c0_i32 = arith.constant 0 : i32
    %c0_i32_0 = arith.constant 0 : i32
    %c0_i32_1 = arith.constant 0 : i32
    return %c0_i32, %c0_i32_0 : i32, i32
  }
  func.func @transform_8(%arg0: i32) -> (i32, i32) {
    %c0_i32 = arith.constant 0 : i32
    %c0_i32_0 = arith.constant 0 : i32
    %c0_i32_1 = arith.constant 0 : i32
    return %c0_i32, %c0_i32_0 : i32, i32
  }
  func.func @transform_9(%arg0: i32) -> (i32, i32) {
    %c0_i32 = arith.constant 0 : i32
    %c0_i32_0 = arith.constant 0 : i32
    return %arg0, %c0_i32 : i32, i32
  }
}

</mosaic_0001>

<llo_original>
// kernel: tpu_custom_call.1
$region0: #{tpu_custom_call.1}
  #allocation0 [shape = 'u32[]', space=smem, size = 0x4, offset = 0x4, fixed_abs, tag = 'smem constant byte address 0x4 - core index']
  #allocation1 [shape = 'u32[144,128]{1,0:T(1,128)}', space=vmem, size = 0x12000, scoped, tag = 'internal scratch']
  %s0 = inlined_call_operand.vmem [shape: f32[2,612], index: 0, kind: input, shape index: {}]
  %s1 = inlined_call_operand.hbm [shape: bf16[612,512], index: 1, kind: input, shape index: {}]
  %s2 = inlined_call_operand.vmem [shape: f32[1,512], index: 2, kind: input, shape index: {}]
  %s3 = inlined_call_operand.hbm [shape: bf16[512,256], index: 3, kind: input, shape index: {}]
  %s4 = inlined_call_operand.vmem [shape: f32[1,256], index: 4, kind: input, shape index: {}]
  %s5 = inlined_call_operand.vmem [shape: bf16[256,128], index: 5, kind: input, shape index: {}]
  %s6 = inlined_call_operand.vmem [shape: f32[1,128], index: 6, kind: input, shape index: {}]
  %s7 = inlined_call_operand.vmem [shape: bf16[128,318], index: 7, kind: input, shape index: {}]
  %s8 = inlined_call_operand.vmem [shape: f32[1,318], index: 8, kind: input, shape index: {}]
  %s9 = inlined_call_operand.hbm [shape: f32[2,318], index: 9, kind: output, shape index: {}]
  %s10 = sld [smem:[#allocation0]]
  $region54: #{tpu_custom_call.1} parent=0
    _
  %s12 = ssub.s32 1, %s10
  %s13 = scalar_select 0, %s12, %s10
  $region1: #{tpu_custom_call.1} parent=0
    #allocation2 [shape = 'u8[630784]{0}', space=vmem, size = 0x9a000, scoped, tag = 'input window, operand 1, single buffered']
    #allocation3 [shape = 's32[1]{0}', space=sflag, size = 0x4, scoped, tag = 'scoped memory for tpu_custom_call.1']
    #allocation4 [shape = 's32[1]{0}', space=sflag, size = 0x4, scoped, tag = 'scoped memory for tpu_custom_call.1']
    #allocation5 [shape = 'u8[262144]{0}', space=vmem, size = 0x40000, scoped, tag = 'input window, operand 3, single buffered']
    #allocation6 [shape = 's32[1]{0}', space=sflag, size = 0x4, scoped, tag = 'scoped memory for tpu_custom_call.1']
    #allocation7 [shape = 'u8[3072]{0}', space=vmem, size = 0xc00, scoped, tag = 'output window, operand 0, single buffered']
    %14 = vsyncpa [#allocation3], 0
    %15 = vsyncpa [#allocation6], 0
    %16 = vsyncpa [#allocation4], 0
    // Predicated region
    $region2: #{tpu_custom_call.1} parent=1 // pred_check
      _
    $region3: #{tpu_custom_call.1} parent=1 // pred_check_branch
      %18 = sbr.rel (0) target = $region5
    $region4: #{tpu_custom_call.1} parent=1 // pred_region
      _
    $region5: #{tpu_custom_call.1} parent=1 // pred_fallthru
      _
    // Predicated region
    $region6: #{tpu_custom_call.1} parent=1 // pred_check
      _
    $region7: #{tpu_custom_call.1} parent=1 // pred_check_branch
      %20 = sbr.rel (0) target = $region9
    $region8: #{tpu_custom_call.1} parent=1 // pred_region
      %s22 = ssub.s32 19712, 19712
      %23 = vsyncadd [#allocation3], %s22
      %s24 = sshll.u32 [#allocation2], 4
      %s25 = int_to_ptr.vmem [resolvable:$true] %s24
      %30 = dma.hbm_to_vmem [thread:$0]  %s1, 19712, %s25, [#allocation3], 256, 256, 16
    $region9: #{tpu_custom_call.1} parent=1 // pred_fallthru
      _
    // Predicated region
    $region10: #{tpu_custom_call.1} parent=1 // pred_check
      _
    $region11: #{tpu_custom_call.1} parent=1 // pred_check_branch
      %32 = sbr.rel (0) target = $region13
    $region12: #{tpu_custom_call.1} parent=1 // pred_region
      _
    $region13: #{tpu_custom_call.1} parent=1 // pred_fallthru
      _
    // Predicated region
    $region14: #{tpu_custom_call.1} parent=1 // pred_check
      _
    $region15: #{tpu_custom_call.1} parent=1 // pred_check_branch
      %34 = sbr.rel (0) target = $region17
    $region16: #{tpu_custom_call.1} parent=1 // pred_region
      %s36 = ssub.s32 8192, 8192
      %37 = vsyncadd [#allocation6], %s36
      %s38 = sshll.u32 [#allocation5], 4
      %s39 = int_to_ptr.vmem [resolvable:$true] %s38
      %44 = dma.hbm_to_vmem [thread:$0]  %s3, 8192, %s39, [#allocation6], 128, 128, 8
    $region17: #{tpu_custom_call.1} parent=1 // pred_fallthru
      _
    // Predicated region
    $region18: #{tpu_custom_call.1} parent=1 // pred_check
      _
    $region19: #{tpu_custom_call.1} parent=1 // pred_check_branch
      %46 = sbr.rel (0) target = $region21
    $region20: #{tpu_custom_call.1} parent=1 // pred_region
      _
    $region21: #{tpu_custom_call.1} parent=1 // pred_fallthru
      _
    // Predicated region
    $region22: #{tpu_custom_call.1} parent=1 // pred_check
      _
    $region23: #{tpu_custom_call.1} parent=1 // pred_check_branch
      %48 = sbr.rel (0) target = $region25
    $region24: #{tpu_custom_call.1} parent=1 // pred_region
      _
    $region25: #{tpu_custom_call.1} parent=1 // pred_fallthru
      _
    // Predicated region
    $region26: #{tpu_custom_call.1} parent=1 // pred_check
      _
    $region27: #{tpu_custom_call.1} parent=1 // pred_check_branch
      %50 = sbr.rel (0) target = $region29
    $region28: #{tpu_custom_call.1} parent=1 // pred_region
      _
    $region29: #{tpu_custom_call.1} parent=1 // pred_fallthru
      _
    // Predicated region
    $region30: #{tpu_custom_call.1} parent=1 // pred_check
      _
    $region31: #{tpu_custom_call.1} parent=1 // pred_check_branch
      %52 = sbr.rel (0) target = $region33
    $region32: #{tpu_custom_call.1} parent=1 // pred_region
      _
    $region33: #{tpu_custom_call.1} parent=1 // pred_fallthru
      _
    // Predicated region
    $region34: #{tpu_custom_call.1} parent=1 // pred_check
      _
    $region35: #{tpu_custom_call.1} parent=1 // pred_check_branch
      %54 = sbr.rel (0) target = $region37
    $region36: #{tpu_custom_call.1} parent=1 // pred_region
      _
    $region37: #{tpu_custom_call.1} parent=1 // pred_fallthru
      _
    // Predicated region
    $region38: #{tpu_custom_call.1} parent=1 // pred_check
      _
    $region39: #{tpu_custom_call.1} parent=1 // pred_check_branch
      %56 = sbr.rel (0) target = $region41
    $region40: #{tpu_custom_call.1} parent=1 // pred_region
      %57 = dma.done [#allocation3], 19712
    $region41: #{tpu_custom_call.1} parent=1 // pred_fallthru
      _
    // Predicated region
    $region42: #{tpu_custom_call.1} parent=1 // pred_check
      _
    $region43: #{tpu_custom_call.1} parent=1 // pred_check_branch
      %59 = sbr.rel (0) target = $region45
    $region44: #{tpu_custom_call.1} parent=1 // pred_region
      %60 = dma.done [#allocation6], 8192
    $region45: #{tpu_custom_call.1} parent=1 // pred_fallthru
      _
    %v62 = vld [vmem:[%s0] sm:$0xff]
    %v63 = vld [vmem:[%s0 + $0x8] sm:$0x3]
    %v66 = vcombine.high %v62, %v62
    %v68 = vunpack.c.l.s4 1983009808
    %v69 = vunpack.c.0.s8 %v68
    %v70 = vlaneseq
    %v71 = vshrl.u32 %v70, 7
    %v72 = vsub.s32 %v69, %v71
    %v73 = vrot.slane %v62, %v72
    %v75 = vunpack.c.l.s4 1983009808
    %v76 = vunpack.c.0.s8 %v75
    %v77 = vlaneseq
    %v78 = vshrl.u32 %v77, 7
    %v79 = vsub.s32 %v76, %v78
    %v80 = vrot.slane %v66, %v79
    %v81 = vcombine.high %v73, %v73
    %v82 = vcombine.high %v80, %v80
    %v84 = vunpack.c.l.s4 1983009808
    %v85 = vunpack.c.0.s8 %v84
    %v86 = vlaneseq
    %v87 = vshrl.u32 %v86, 7
    %v88 = vsub.s32 %v85, %v87
    %v89 = vrot.slane %v63, %v88
    %v95 = vpack.c.bf16 %v73, %v73
    %v96 = vpack.c.bf16 %v81, %v81
    %v97 = vpack.c.bf16 %v80, %v80
    %v98 = vpack.c.bf16 %v82, %v82
    %v99 = vpack.c.bf16 %v89, %v89
    %v100 = vld [vmem:[#allocation2] sm:$0xff]
    %v101 = vld [vmem:[#allocation2 + $0x8] sm:$0xff]
    %v102 = vld [vmem:[#allocation2 + $0x10] sm:$0xff]
    %v103 = vld [vmem:[#allocation2 + $0x18] sm:$0xff]
    %v104 = vld [vmem:[#allocation2 + $0x20] sm:$0xff]
    %v105 = vld [vmem:[#allocation2 + $0x28] sm:$0xff]
    %v106 = vld [vmem:[#allocation2 + $0x30] sm:$0xff]
    %v107 = vld [vmem:[#allocation2 + $0x38] sm:$0xff]
    %v108 = vld [vmem:[#allocation2 + $0x40] sm:$0xff]
    %v109 = vld [vmem:[#allocation2 + $0x48] sm:$0xff]
    %v110 = vld [vmem:[#allocation2 + $0x50] sm:$0xff]
    %v111 = vld [vmem:[#allocation2 + $0x58] sm:$0xff]
    %v112 = vld [vmem:[#allocation2 + $0x60] sm:$0xff]
    %v113 = vld [vmem:[#allocation2 + $0x68] sm:$0xff]
    %v114 = vld [vmem:[#allocation2 + $0x70] sm:$0xff]
    %v115 = vld [vmem:[#allocation2 + $0x78] sm:$0xff]
    %v116 = vld [vmem:[#allocation2 + $0x80] sm:$0xff]
    %v117 = vld [vmem:[#allocation2 + $0x88] sm:$0xff]
    %v118 = vld [vmem:[#allocation2 + $0x90] sm:$0xff]
    %v119 = vld [vmem:[#allocation2 + $0x98] sm:$0xff]
    %v120 = vld [vmem:[#allocation2 + $0xa0] sm:$0xff]
    %v121 = vld [vmem:[#allocation2 + $0xa8] sm:$0xff]
    %v122 = vld [vmem:[#allocation2 + $0xb0] sm:$0xff]
    %v123 = vld [vmem:[#allocation2 + $0xb8] sm:$0xff]
    %v124 = vld [vmem:[#allocation2 + $0xc0] sm:$0xff]
    %v125 = vld [vmem:[#allocation2 + $0xc8] sm:$0xff]
    %v126 = vld [vmem:[#allocation2 + $0xd0] sm:$0xff]
    %v127 = vld [vmem:[#allocation2 + $0xd8] sm:$0xff]
    %v128 = vld [vmem:[#allocation2 + $0xe0] sm:$0xff]
    %v129 = vld [vmem:[#allocation2 + $0xe8] sm:$0xff]
    %v130 = vld [vmem:[#allocation2 + $0xf0] sm:$0xff]
    %v131 = vld [vmem:[#allocation2 + $0xf8] sm:$0xff]
    %v132 = vld [vmem:[#allocation2 + $0x100] sm:$0xff]
    %v133 = vld [vmem:[#allocation2 + $0x108] sm:$0xff]
    %v134 = vld [vmem:[#allocation2 + $0x110] sm:$0xff]
    %v135 = vld [vmem:[#allocation2 + $0x118] sm:$0xff]
    %v136 = vld [vmem:[#allocation2 + $0x120] sm:$0xff]
    %v137 = vld [vmem:[#allocation2 + $0x128] sm:$0xff]
    %v138 = vld [vmem:[#allocation2 + $0x130] sm:$0xff]
    %v139 = vld [vmem:[#allocation2 + $0x138] sm:$0xff]
    %v140 = vld [vmem:[#allocation2 + $0x140] sm:$0xff]
    %v141 = vld [vmem:[#allocation2 + $0x148] sm:$0xff]
    %v142 = vld [vmem:[#allocation2 + $0x150] sm:$0xff]
    %v143 = vld [vmem:[#allocation2 + $0x158] sm:$0xff]
    %v144 = vld [vmem:[#allocation2 + $0x160] sm:$0xff]
    %v145 = vld [vmem:[#allocation2 + $0x168] sm:$0xff]
    %v146 = vld [vmem:[#allocation2 + $0x170] sm:$0xff]
    %v147 = vld [vmem:[#allocation2 + $0x178] sm:$0xff]
    %v148 = vld [vmem:[#allocation2 + $0x180] sm:$0xff]
    %v149 = vld [vmem:[#allocation2 + $0x188] sm:$0xff]
    %v150 = vld [vmem:[#allocation2 + $0x190] sm:$0xff]
    %v151 = vld [vmem:[#allocation2 + $0x198] sm:$0xff]
    %v152 = vld [vmem:[#allocation2 + $0x1a0] sm:$0xff]
    %v153 = vld [vmem:[#allocation2 + $0x1a8] sm:$0xff]
    %v154 = vld [vmem:[#allocation2 + $0x1b0] sm:$0xff]
    %v155 = vld [vmem:[#allocation2 + $0x1b8] sm:$0xff]
    %v156 = vld [vmem:[#allocation2 + $0x1c0] sm:$0xff]
    %v157 = vld [vmem:[#allocation2 + $0x1c8] sm:$0xff]
    %v158 = vld [vmem:[#allocation2 + $0x1d0] sm:$0xff]
    %v159 = vld [vmem:[#allocation2 + $0x1d8] sm:$0xff]
    %v160 = vld [vmem:[#allocation2 + $0x1e0] sm:$0xff]
    %v161 = vld [vmem:[#allocation2 + $0x1e8] sm:$0xff]
    %v162 = vld [vmem:[#allocation2 + $0x1f0] sm:$0xff]
    %v163 = vld [vmem:[#allocation2 + $0x1f8] sm:$0xff]
    %v164 = vld [vmem:[#allocation2 + $0x200] sm:$0xff]
    %v165 = vld [vmem:[#allocation2 + $0x208] sm:$0xff]
    %v166 = vld [vmem:[#allocation2 + $0x210] sm:$0xff]
    %v167 = vld [vmem:[#allocation2 + $0x218] sm:$0xff]
    %v168 = vld [vmem:[#allocation2 + $0x220] sm:$0xff]
    %v169 = vld [vmem:[#allocation2 + $0x228] sm:$0xff]
    %v170 = vld [vmem:[#allocation2 + $0x230] sm:$0xff]
    %v171 = vld [vmem:[#allocation2 + $0x238] sm:$0xff]
    %v172 = vld [vmem:[#allocation2 + $0x240] sm:$0xff]
    %v173 = vld [vmem:[#allocation2 + $0x248] sm:$0xff]
    %v174 = vld [vmem:[#allocation2 + $0x250] sm:$0xff]
    %v175 = vld [vmem:[#allocation2 + $0x258] sm:$0xff]
    %v176 = vld [vmem:[#allocation2 + $0x260] sm:$0xff]
    %v177 = vld [vmem:[#allocation2 + $0x268] sm:$0xff]
    %v178 = vld [vmem:[#allocation2 + $0x270] sm:$0xff]
    %v179 = vld [vmem:[#allocation2 + $0x278] sm:$0xff]
    %v180 = vld [vmem:[#allocation2 + $0x280] sm:$0xff]
    %v181 = vld [vmem:[#allocation2 + $0x288] sm:$0xff]
    %v182 = vld [vmem:[#allocation2 + $0x290] sm:$0xff]
    %v183 = vld [vmem:[#allocation2 + $0x298] sm:$0xff]
    %v184 = vld [vmem:[#allocation2 + $0x2a0] sm:$0xff]
    %v185 = vld [vmem:[#allocation2 + $0x2a8] sm:$0xff]
    %v186 = vld [vmem:[#allocation2 + $0x2b0] sm:$0xff]
    %v187 = vld [vmem:[#allocation2 + $0x2b8] sm:$0xff]
    %v188 = vld [vmem:[#allocation2 + $0x2c0] sm:$0xff]
    %v189 = vld [vmem:[#allocation2 + $0x2c8] sm:$0xff]
    %v190 = vld [vmem:[#allocation2 + $0x2d0] sm:$0xff]
    %v191 = vld [vmem:[#allocation2 + $0x2d8] sm:$0xff]
    %v192 = vld [vmem:[#allocation2 + $0x2e0] sm:$0xff]
    %v193 = vld [vmem:[#allocation2 + $0x2e8] sm:$0xff]
    %v194 = vld [vmem:[#allocation2 + $0x2f0] sm:$0xff]
    %v195 = vld [vmem:[#allocation2 + $0x2f8] sm:$0xff]
    %v196 = vld [vmem:[#allocation2 + $0x300] sm:$0xff]
    %v197 = vld [vmem:[#allocation2 + $0x308] sm:$0xff]
    %v198 = vld [vmem:[#allocation2 + $0x310] sm:$0xff]
    %v199 = vld [vmem:[#allocation2 + $0x318] sm:$0xff]
    %v200 = vld [vmem:[#allocation2 + $0x320] sm:$0xff]
    %v201 = vld [vmem:[#allocation2 + $0x328] sm:$0xff]
    %v202 = vld [vmem:[#allocation2 + $0x330] sm:$0xff]
    %v203 = vld [vmem:[#allocation2 + $0x338] sm:$0xff]
    %v204 = vld [vmem:[#allocation2 + $0x340] sm:$0xff]
    %v205 = vld [vmem:[#allocation2 + $0x348] sm:$0xff]
    %v206 = vld [vmem:[#allocation2 + $0x350] sm:$0xff]
    %v207 = vld [vmem:[#allocation2 + $0x358] sm:$0xff]
    %v208 = vld [vmem:[#allocation2 + $0x360] sm:$0xff]
    %v209 = vld [vmem:[#allocation2 + $0x368] sm:$0xff]
    %v210 = vld [vmem:[#allocation2 + $0x370] sm:$0xff]
    %v211 = vld [vmem:[#allocation2 + $0x378] sm:$0xff]
    %v212 = vld [vmem:[#allocation2 + $0x380] sm:$0xff]
    %v213 = vld [vmem:[#allocation2 + $0x388] sm:$0xff]
    %v214 = vld [vmem:[#allocation2 + $0x390] sm:$0xff]
    %v215 = vld [vmem:[#allocation2 + $0x398] sm:$0xff]
    %v216 = vld [vmem:[#allocation2 + $0x3a0] sm:$0xff]
    %v217 = vld [vmem:[#allocation2 + $0x3a8] sm:$0xff]
    %v218 = vld [vmem:[#allocation2 + $0x3b0] sm:$0xff]
    %v219 = vld [vmem:[#allocation2 + $0x3b8] sm:$0xff]
    %v220 = vld [vmem:[#allocation2 + $0x3c0] sm:$0xff]
    %v221 = vld [vmem:[#allocation2 + $0x3c8] sm:$0xff]
    %v222 = vld [vmem:[#allocation2 + $0x3d0] sm:$0xff]
    %v223 = vld [vmem:[#allocation2 + $0x3d8] sm:$0xff]
    %v224 = vld [vmem:[#allocation2 + $0x3e0] sm:$0xff]
    %v225 = vld [vmem:[#allocation2 + $0x3e8] sm:$0xff]
    %v226 = vld [vmem:[#allocation2 + $0x3f0] sm:$0xff]
    %v227 = vld [vmem:[#allocation2 + $0x3f8] sm:$0xff]
    %v228 = vld [vmem:[#allocation2 + $0x400] sm:$0xff]
    %v229 = vld [vmem:[#allocation2 + $0x408] sm:$0xff]
    %v230 = vld [vmem:[#allocation2 + $0x410] sm:$0xff]
    %v231 = vld [vmem:[#allocation2 + $0x418] sm:$0xff]
    %v232 = vld [vmem:[#allocation2 + $0x420] sm:$0xff]
    %v233 = vld [vmem:[#allocation2 + $0x428] sm:$0xff]
    %v234 = vld [vmem:[#allocation2 + $0x430] sm:$0xff]
    %v235 = vld [vmem:[#allocation2 + $0x438] sm:$0xff]
    %v236 = vld [vmem:[#allocation2 + $0x440] sm:$0xff]
    %v237 = vld [vmem:[#allocation2 + $0x448] sm:$0xff]
    %v238 = vld [vmem:[#allocation2 + $0x450] sm:$0xff]
    %v239 = vld [vmem:[#allocation2 + $0x458] sm:$0xff]
    %v240 = vld [vmem:[#allocation2 + $0x460] sm:$0xff]
    %v241 = vld [vmem:[#allocation2 + $0x468] sm:$0xff]
    %v242 = vld [vmem:[#allocation2 + $0x470] sm:$0xff]
    %v243 = vld [vmem:[#allocation2 + $0x478] sm:$0xff]
    %v244 = vld [vmem:[#allocation2 + $0x480] sm:$0xff]
    %v245 = vld [vmem:[#allocation2 + $0x488] sm:$0xff]
    %v246 = vld [vmem:[#allocation2 + $0x490] sm:$0xff]
    %v247 = vld [vmem:[#allocation2 + $0x498] sm:$0xff]
    %v248 = vld [vmem:[#allocation2 + $0x4a0] sm:$0xff]
    %v249 = vld [vmem:[#allocation2 + $0x4a8] sm:$0xff]
    %v250 = vld [vmem:[#allocation2 + $0x4b0] sm:$0xff]
    %v251 = vld [vmem:[#allocation2 + $0x4b8] sm:$0xff]
    %v252 = vld [vmem:[#allocation2 + $0x4c0] sm:$0x33]
    %v253 = vld [vmem:[#allocation2 + $0x4c8] sm:$0x33]
    %v254 = vld [vmem:[%s2] sm:$0xf]
    %v256 = vlaneseq
    %v257 = vshrl.u32 %v256, 7
    %v258 = vsub.s32 0, %v257
    %v259 = vrot.slane %v254, %v258
    %v260 = vlaneseq
    %v261 = vshrl.u32 %v260, 7
    %v262 = vsub.s32 1, %v261
    %v263 = vrot.slane %v254, %v262
    %v264 = vlaneseq
    %v265 = vshrl.u32 %v264, 7
    %v266 = vsub.s32 2, %v265
    %v267 = vrot.slane %v254, %v266
    %v268 = vlaneseq
    %v269 = vshrl.u32 %v268, 7
    %v270 = vsub.s32 3, %v269
    %v271 = vrot.slane %v254, %v270
    %v430 = vunpack.c.l.b16 %v100
    %v431 = vunpack.c.h.b16 %v100
    %v432 = vunpack.c.l.b16 %v101
    %v433 = vunpack.c.h.b16 %v101
    %v434 = vunpack.c.l.b16 %v102
    %v435 = vunpack.c.h.b16 %v102
    %v436 = vunpack.c.l.b16 %v103
    %v437 = vunpack.c.h.b16 %v103
    %v438 = vunpack.c.l.b16 %v104
    %v439 = vunpack.c.h.b16 %v104
    %v440 = vunpack.c.l.b16 %v105
    %v441 = vunpack.c.h.b16 %v105
    %v442 = vunpack.c.l.b16 %v106
    %v443 = vunpack.c.h.b16 %v106
    %v444 = vunpack.c.l.b16 %v107
    %v445 = vunpack.c.h.b16 %v107
    %v446 = vunpack.c.l.b16 %v108
    %v447 = vunpack.c.h.b16 %v108
    %v448 = vunpack.c.l.b16 %v109
    %v449 = vunpack.c.h.b16 %v109
    %v450 = vunpack.c.l.b16 %v110
    %v451 = vunpack.c.h.b16 %v110
    %v452 = vunpack.c.l.b16 %v111
    %v453 = vunpack.c.h.b16 %v111
    %v454 = vunpack.c.l.b16 %v112
    %v455 = vunpack.c.h.b16 %v112
    %v456 = vunpack.c.l.b16 %v113
    %v457 = vunpack.c.h.b16 %v113
    %v458 = vunpack.c.l.b16 %v114
    %v459 = vunpack.c.h.b16 %v114
    %v460 = vunpack.c.l.b16 %v115
    %v461 = vunpack.c.h.b16 %v115
    %v462 = vunpack.c.l.b16 %v116
    %v463 = vunpack.c.h.b16 %v116
    %v464 = vunpack.c.l.b16 %v117
    %v465 = vunpack.c.h.b16 %v117
    %v466 = vunpack.c.l.b16 %v118
    %v467 = vunpack.c.h.b16 %v118
    %v468 = vunpack.c.l.b16 %v119
    %v469 = vunpack.c.h.b16 %v119
    %v470 = vunpack.c.l.b16 %v120
    %v471 = vunpack.c.h.b16 %v120
    %v472 = vunpack.c.l.b16 %v121
    %v473 = vunpack.c.h.b16 %v121
    %v474 = vunpack.c.l.b16 %v122
    %v475 = vunpack.c.h.b16 %v122
    %v476 = vunpack.c.l.b16 %v123
    %v477 = vunpack.c.h.b16 %v123
    %v478 = vunpack.c.l.b16 %v124
    %v479 = vunpack.c.h.b16 %v124
    %v480 = vunpack.c.l.b16 %v125
    %v481 = vunpack.c.h.b16 %v125
    %v482 = vunpack.c.l.b16 %v126
    %v483 = vunpack.c.h.b16 %v126
    %v484 = vunpack.c.l.b16 %v127
    %v485 = vunpack.c.h.b16 %v127
    %v486 = vunpack.c.l.b16 %v128
    %v487 = vunpack.c.h.b16 %v128
    %v488 = vunpack.c.l.b16 %v129
    %v489 = vunpack.c.h.b16 %v129
    %v490 = vunpack.c.l.b16 %v130
    %v491 = vunpack.c.h.b16 %v130
    %v492 = vunpack.c.l.b16 %v131
    %v493 = vunpack.c.h.b16 %v131
    %v494 = vunpack.c.l.b16 %v132
    %v495 = vunpack.c.h.b16 %v132
    %v496 = vunpack.c.l.b16 %v133
    %v497 = vunpack.c.h.b16 %v133
    %v498 = vunpack.c.l.b16 %v134
    %v499 = vunpack.c.h.b16 %v134
    %v500 = vunpack.c.l.b16 %v135
    %v501 = vunpack.c.h.b16 %v135
    %v502 = vunpack.c.l.b16 %v136
    %v503 = vunpack.c.h.b16 %v136
    %v504 = vunpack.c.l.b16 %v137
    %v505 = vunpack.c.h.b16 %v137
    %v506 = vunpack.c.l.b16 %v138
    %v507 = vunpack.c.h.b16 %v138
    %v508 = vunpack.c.l.b16 %v139
    %v509 = vunpack.c.h.b16 %v139
    %v510 = vunpack.c.l.b16 %v140
    %v511 = vunpack.c.h.b16 %v140
    %v512 = vunpack.c.l.b16 %v141
    %v513 = vunpack.c.h.b16 %v141
    %v514 = vunpack.c.l.b16 %v142
    %v515 = vunpack.c.h.b16 %v142
    %v516 = vunpack.c.l.b16 %v143
    %v517 = vunpack.c.h.b16 %v143
    %v518 = vunpack.c.l.b16 %v144
    %v519 = vunpack.c.h.b16 %v144
    %v520 = vunpack.c.l.b16 %v145
    %v521 = vunpack.c.h.b16 %v145
    %v522 = vunpack.c.l.b16 %v146
    %v523 = vunpack.c.h.b16 %v146
    %v524 = vunpack.c.l.b16 %v147
    %v525 = vunpack.c.h.b16 %v147
    %v526 = vunpack.c.l.b16 %v148
    %v527 = vunpack.c.h.b16 %v148
    %v528 = vunpack.c.l.b16 %v149
    %v529 = vunpack.c.h.b16 %v149
    %v530 = vunpack.c.l.b16 %v150
    %v531 = vunpack.c.h.b16 %v150
    %v532 = vunpack.c.l.b16 %v151
    %v533 = vunpack.c.h.b16 %v151
    %v534 = vunpack.c.l.b16 %v152
    %v535 = vunpack.c.h.b16 %v152
    %v536 = vunpack.c.l.b16 %v153
    %v537 = vunpack.c.h.b16 %v153
    %v538 = vunpack.c.l.b16 %v154
    %v539 = vunpack.c.h.b16 %v154
    %v540 = vunpack.c.l.b16 %v155
    %v541 = vunpack.c.h.b16 %v155
    %v542 = vunpack.c.l.b16 %v156
    %v543 = vunpack.c.h.b16 %v156
    %v544 = vunpack.c.l.b16 %v157
    %v545 = vunpack.c.h.b16 %v157
    %v546 = vunpack.c.l.b16 %v158
    %v547 = vunpack.c.h.b16 %v158
    %v548 = vunpack.c.l.b16 %v159
    %v549 = vunpack.c.h.b16 %v159
    %v550 = vunpack.c.l.b16 %v160
    %v551 = vunpack.c.h.b16 %v160
    %v552 = vunpack.c.l.b16 %v161
    %v553 = vunpack.c.h.b16 %v161
    %v554 = vunpack.c.l.b16 %v162
    %v555 = vunpack.c.h.b16 %v162
    %v556 = vunpack.c.l.b16 %v163
    %v557 = vunpack.c.h.b16 %v163
    %v558 = vunpack.c.l.b16 %v164
    %v559 = vunpack.c.h.b16 %v164
    %v560 = vunpack.c.l.b16 %v165
    %v561 = vunpack.c.h.b16 %v165
    %v562 = vunpack.c.l.b16 %v166
    %v563 = vunpack.c.h.b16 %v166
    %v564 = vunpack.c.l.b16 %v167
    %v565 = vunpack.c.h.b16 %v167
    %v566 = vunpack.c.l.b16 %v168
    %v567 = vunpack.c.h.b16 %v168
    %v568 = vunpack.c.l.b16 %v169
    %v569 = vunpack.c.h.b16 %v169
    %v570 = vunpack.c.l.b16 %v170
    %v571 = vunpack.c.h.b16 %v170
    %v572 = vunpack.c.l.b16 %v171
    %v573 = vunpack.c.h.b16 %v171
    %v574 = vunpack.c.l.b16 %v172
    %v575 = vunpack.c.h.b16 %v172
    %v576 = vunpack.c.l.b16 %v173
    %v577 = vunpack.c.h.b16 %v173
    %v578 = vunpack.c.l.b16 %v174
    %v579 = vunpack.c.h.b16 %v174
    %v580 = vunpack.c.l.b16 %v175
    %v581 = vunpack.c.h.b16 %v175
    %v582 = vunpack.c.l.b16 %v176
    %v583 = vunpack.c.h.b16 %v176
    %v584 = vunpack.c.l.b16 %v177
    %v585 = vunpack.c.h.b16 %v177
    %v586 = vunpack.c.l.b16 %v178
    %v587 = vunpack.c.h.b16 %v178
    %v588 = vunpack.c.l.b16 %v179
    %v589 = vunpack.c.h.b16 %v179
    %v590 = vunpack.c.l.b16 %v180
    %v591 = vunpack.c.h.b16 %v180
    %v592 = vunpack.c.l.b16 %v181
    %v593 = vunpack.c.h.b16 %v181
    %v594 = vunpack.c.l.b16 %v182
    %v595 = vunpack.c.h.b16 %v182
    %v596 = vunpack.c.l.b16 %v183
    %v597 = vunpack.c.h.b16 %v183
    %v598 = vunpack.c.l.b16 %v184
    %v599 = vunpack.c.h.b16 %v184
    %v600 = vunpack.c.l.b16 %v185
    %v601 = vunpack.c.h.b16 %v185
    %v602 = vunpack.c.l.b16 %v186
    %v603 = vunpack.c.h.b16 %v186
    %v604 = vunpack.c.l.b16 %v187
    %v605 = vunpack.c.h.b16 %v187
    %v606 = vunpack.c.l.b16 %v188
    %v607 = vunpack.c.h.b16 %v188
    %v608 = vunpack.c.l.b16 %v189
    %v609 = vunpack.c.h.b16 %v189
    %v610 = vunpack.c.l.b16 %v190
    %v611 = vunpack.c.h.b16 %v190
    %v612 = vunpack.c.l.b16 %v191
    %v613 = vunpack.c.h.b16 %v191
    %v614 = vunpack.c.l.b16 %v192
    %v615 = vunpack.c.h.b16 %v192
    %v616 = vunpack.c.l.b16 %v193
    %v617 = vunpack.c.h.b16 %v193
    %v618 = vunpack.c.l.b16 %v194
    %v619 = vunpack.c.h.b16 %v194
    %v620 = vunpack.c.l.b16 %v195
    %v621 = vunpack.c.h.b16 %v195
    %v622 = vunpack.c.l.b16 %v196
    %v623 = vunpack.c.h.b16 %v196
    %v624 = vunpack.c.l.b16 %v197
    %v625 = vunpack.c.h.b16 %v197
    %v626 = vunpack.c.l.b16 %v198
    %v627 = vunpack.c.h.b16 %v198
    %v628 = vunpack.c.l.b16 %v199
    %v629 = vunpack.c.h.b16 %v199
    %v630 = vunpack.c.l.b16 %v200
    %v631 = vunpack.c.h.b16 %v200
    %v632 = vunpack.c.l.b16 %v201
    %v633 = vunpack.c.h.b16 %v201
    %v634 = vunpack.c.l.b16 %v202
    %v635 = vunpack.c.h.b16 %v202
    %v636 = vunpack.c.l.b16 %v203
    %v637 = vunpack.c.h.b16 %v203
    %v638 = vunpack.c.l.b16 %v204
    %v639 = vunpack.c.h.b16 %v204
    %v640 = vunpack.c.l.b16 %v205
    %v641 = vunpack.c.h.b16 %v205
    %v642 = vunpack.c.l.b16 %v206
    %v643 = vunpack.c.h.b16 %v206
    %v644 = vunpack.c.l.b16 %v207
    %v645 = vunpack.c.h.b16 %v207
    %v646 = vunpack.c.l.b16 %v208
    %v647 = vunpack.c.h.b16 %v208
    %v648 = vunpack.c.l.b16 %v209
    %v649 = vunpack.c.h.b16 %v209
    %v650 = vunpack.c.l.b16 %v210
    %v651 = vunpack.c.h.b16 %v210
    %v652 = vunpack.c.l.b16 %v211
    %v653 = vunpack.c.h.b16 %v211
    %v654 = vunpack.c.l.b16 %v212
    %v655 = vunpack.c.h.b16 %v212
    %v656 = vunpack.c.l.b16 %v213
    %v657 = vunpack.c.h.b16 %v213
    %v658 = vunpack.c.l.b16 %v214
    %v659 = vunpack.c.h.b16 %v214
    %v660 = vunpack.c.l.b16 %v215
    %v661 = vunpack.c.h.b16 %v215
    %v662 = vunpack.c.l.b16 %v216
    %v663 = vunpack.c.h.b16 %v216
    %v664 = vunpack.c.l.b16 %v217
    %v665 = vunpack.c.h.b16 %v217
    %v666 = vunpack.c.l.b16 %v218
    %v667 = vunpack.c.h.b16 %v218
    %v668 = vunpack.c.l.b16 %v219
    %v669 = vunpack.c.h.b16 %v219
    %v670 = vunpack.c.l.b16 %v220
    %v671 = vunpack.c.h.b16 %v220
    %v672 = vunpack.c.l.b16 %v221
    %v673 = vunpack.c.h.b16 %v221
    %v674 = vunpack.c.l.b16 %v222
    %v675 = vunpack.c.h.b16 %v222
    %v676 = vunpack.c.l.b16 %v223
    %v677 = vunpack.c.h.b16 %v223
    %v678 = vunpack.c.l.b16 %v224
    %v679 = vunpack.c.h.b16 %v224
    %v680 = vunpack.c.l.b16 %v225
    %v681 = vunpack.c.h.b16 %v225
    %v682 = vunpack.c.l.b16 %v226
    %v683 = vunpack.c.h.b16 %v226
    %v684 = vunpack.c.l.b16 %v227
    %v685 = vunpack.c.h.b16 %v227
    %v686 = vunpack.c.l.b16 %v228
    %v687 = vunpack.c.h.b16 %v228
    %v688 = vunpack.c.l.b16 %v229
    %v689 = vunpack.c.h.b16 %v229
    %v690 = vunpack.c.l.b16 %v230
    %v691 = vunpack.c.h.b16 %v230
    %v692 = vunpack.c.l.b16 %v231
    %v693 = vunpack.c.h.b16 %v231
    %v694 = vunpack.c.l.b16 %v232
    %v695 = vunpack.c.h.b16 %v232
    %v696 = vunpack.c.l.b16 %v233
    %v697 = vunpack.c.h.b16 %v233
    %v698 = vunpack.c.l.b16 %v234
    %v699 = vunpack.c.h.b16 %v234
    %v700 = vunpack.c.l.b16 %v235
    %v701 = vunpack.c.h.b16 %v235
    %v702 = vunpack.c.l.b16 %v236
    %v703 = vunpack.c.h.b16 %v236
    %v704 = vunpack.c.l.b16 %v237
    %v705 = vunpack.c.h.b16 %v237
    %v706 = vunpack.c.l.b16 %v238
    %v707 = vunpack.c.h.b16 %v238
    %v708 = vunpack.c.l.b16 %v239
    %v709 = vunpack.c.h.b16 %v239
    %v710 = vunpack.c.l.b16 %v240
    %v711 = vunpack.c.h.b16 %v240
    %v712 = vunpack.c.l.b16 %v241
    %v713 = vunpack.c.h.b16 %v241
    %v714 = vunpack.c.l.b16 %v242
    %v715 = vunpack.c.h.b16 %v242
    %v716 = vunpack.c.l.b16 %v243
    %v717 = vunpack.c.h.b16 %v243
    %v718 = vunpack.c.l.b16 %v244
    %v719 = vunpack.c.h.b16 %v244
    %v720 = vunpack.c.l.b16 %v245
    %v721 = vunpack.c.h.b16 %v245
    %v722 = vunpack.c.l.b16 %v246
    %v723 = vunpack.c.h.b16 %v246
    %v724 = vunpack.c.l.b16 %v247
    %v725 = vunpack.c.h.b16 %v247
    %v726 = vunpack.c.l.b16 %v248
    %v727 = vunpack.c.h.b16 %v248
    %v728 = vunpack.c.l.b16 %v249
    %v729 = vunpack.c.h.b16 %v249
    %v730 = vunpack.c.l.b16 %v250
    %v731 = vunpack.c.h.b16 %v250
    %v732 = vunpack.c.l.b16 %v251
    %v733 = vunpack.c.h.b16 %v251
    %v734 = vunpack.c.l.b16 %v252
    %v735 = vunpack.c.h.b16 %v252
    %v736 = vunpack.c.l.b16 %v253
    %v737 = vunpack.c.h.b16 %v253
    %v738 = vpack.c.b16 %v434, %v430
    %v739 = vpack.c.b16 %v435, %v431
    %v740 = vpack.c.b16 %v436, %v432
    %v741 = vpack.c.b16 %v437, %v433
    %v742 = vpack.c.b16 %v442, %v438
    %v743 = vpack.c.b16 %v443, %v439
    %v744 = vpack.c.b16 %v444, %v440
    %v745 = vpack.c.b16 %v445, %v441
    %v746 = vpack.c.b16 %v450, %v446
    %v747 = vpack.c.b16 %v451, %v447
    %v748 = vpack.c.b16 %v452, %v448
    %v749 = vpack.c.b16 %v453, %v449
    %v750 = vpack.c.b16 %v458, %v454
    %v751 = vpack.c.b16 %v459, %v455
    %v752 = vpack.c.b16 %v460, %v456
    %v753 = vpack.c.b16 %v461, %v457
    %v754 = vpack.c.b16 %v466, %v462
    %v755 = vpack.c.b16 %v467, %v463
    %v756 = vpack.c.b16 %v468, %v464
    %v757 = vpack.c.b16 %v469, %v465
    %v758 = vpack.c.b16 %v474, %v470
    %v759 = vpack.c.b16 %v475, %v471
    %v760 = vpack.c.b16 %v476, %v472
    %v761 = vpack.c.b16 %v477, %v473
    %v762 = vpack.c.b16 %v482, %v478
    %v763 = vpack.c.b16 %v483, %v479
    %v764 = vpack.c.b16 %v484, %v480
    %v765 = vpack.c.b16 %v485, %v481
    %v766 = vpack.c.b16 %v490, %v486
    %v767 = vpack.c.b16 %v491, %v487
    %v768 = vpack.c.b16 %v492, %v488
    %v769 = vpack.c.b16 %v493, %v489
    %v770 = vpack.c.b16 %v498, %v494
    %v771 = vpack.c.b16 %v499, %v495
    %v772 = vpack.c.b16 %v500, %v496
    %v773 = vpack.c.b16 %v501, %v497
    %v774 = vpack.c.b16 %v506, %v502
    %v775 = vpack.c.b16 %v507, %v503
    %v776 = vpack.c.b16 %v508, %v504
    %v777 = vpack.c.b16 %v509, %v505
    %v778 = vpack.c.b16 %v514, %v510
    %v779 = vpack.c.b16 %v515, %v511
    %v780 = vpack.c.b16 %v516, %v512
    %v781 = vpack.c.b16 %v517, %v513
    %v782 = vpack.c.b16 %v522, %v518
    %v783 = vpack.c.b16 %v523, %v519
    %v784 = vpack.c.b16 %v524, %v520
    %v785 = vpack.c.b16 %v525, %v521
    %v786 = vpack.c.b16 %v530, %v526
    %v787 = vpack.c.b16 %v531, %v527
    %v788 = vpack.c.b16 %v532, %v528
    %v789 = vpack.c.b16 %v533, %v529
    %v790 = vpack.c.b16 %v538, %v534
    %v791 = vpack.c.b16 %v539, %v535
    %v792 = vpack.c.b16 %v540, %v536
    %v793 = vpack.c.b16 %v541, %v537
    %v794 = vpack.c.b16 %v546, %v542
    %v795 = vpack.c.b16 %v547, %v543
    %v796 = vpack.c.b16 %v548, %v544
    %v797 = vpack.c.b16 %v549, %v545
    %v798 = vpack.c.b16 %v554, %v550
    %v799 = vpack.c.b16 %v555, %v551
    %v800 = vpack.c.b16 %v556, %v552
    %v801 = vpack.c.b16 %v557, %v553
    %v802 = vpack.c.b16 %v562, %v558
    %v803 = vpack.c.b16 %v563, %v559
    %v804 = vpack.c.b16 %v564, %v560
    %v805 = vpack.c.b16 %v565, %v561
    %v806 = vpack.c.b16 %v570, %v566
    %v807 = vpack.c.b16 %v571, %v567
    %v808 = vpack.c.b16 %v572, %v568
    %v809 = vpack.c.b16 %v573, %v569
    %v810 = vpack.c.b16 %v578, %v574
    %v811 = vpack.c.b16 %v579, %v575
    %v812 = vpack.c.b16 %v580, %v576
    %v813 = vpack.c.b16 %v581, %v577
    %v814 = vpack.c.b16 %v586, %v582
    %v815 = vpack.c.b16 %v587, %v583
    %v816 = vpack.c.b16 %v588, %v584
    %v817 = vpack.c.b16 %v589, %v585
    %v818 = vpack.c.b16 %v594, %v590
    %v819 = vpack.c.b16 %v595, %v591
    %v820 = vpack.c.b16 %v596, %v592
    %v821 = vpack.c.b16 %v597, %v593
    %v822 = vpack.c.b16 %v602, %v598
    %v823 = vpack.c.b16 %v603, %v599
    %v824 = vpack.c.b16 %v604, %v600
    %v825 = vpack.c.b16 %v605, %v601
    %v826 = vpack.c.b16 %v610, %v606
    %v827 = vpack.c.b16 %v611, %v607
    %v828 = vpack.c.b16 %v612, %v608
    %v829 = vpack.c.b16 %v613, %v609
    %v830 = vpack.c.b16 %v618, %v614
    %v831 = vpack.c.b16 %v619, %v615
    %v832 = vpack.c.b16 %v620, %v616
    %v833 = vpack.c.b16 %v621, %v617
    %v834 = vpack.c.b16 %v626, %v622
    %v835 = vpack.c.b16 %v627, %v623
    %v836 = vpack.c.b16 %v628, %v624
    %v837 = vpack.c.b16 %v629, %v625
    %v838 = vpack.c.b16 %v634, %v630
    %v839 = vpack.c.b16 %v635, %v631
    %v840 = vpack.c.b16 %v636, %v632
    %v841 = vpack.c.b16 %v637, %v633
    %v842 = vpack.c.b16 %v642, %v638
    %v843 = vpack.c.b16 %v643, %v639
    %v844 = vpack.c.b16 %v644, %v640
    %v845 = vpack.c.b16 %v645, %v641
    %v846 = vpack.c.b16 %v650, %v646
    %v847 = vpack.c.b16 %v651, %v647
    %v848 = vpack.c.b16 %v652, %v648
    %v849 = vpack.c.b16 %v653, %v649
    %v850 = vpack.c.b16 %v658, %v654
    %v851 = vpack.c.b16 %v659, %v655
    %v852 = vpack.c.b16 %v660, %v656
    %v853 = vpack.c.b16 %v661, %v657
    %v854 = vpack.c.b16 %v666, %v662
    %v855 = vpack.c.b16 %v667, %v663
    %v856 = vpack.c.b16 %v668, %v664
    %v857 = vpack.c.b16 %v669, %v665
    %v858 = vpack.c.b16 %v674, %v670
    %v859 = vpack.c.b16 %v675, %v671
    %v860 = vpack.c.b16 %v676, %v672
    %v861 = vpack.c.b16 %v677, %v673
    %v862 = vpack.c.b16 %v682, %v678
    %v863 = vpack.c.b16 %v683, %v679
    %v864 = vpack.c.b16 %v684, %v680
    %v865 = vpack.c.b16 %v685, %v681
    %v866 = vpack.c.b16 %v690, %v686
    %v867 = vpack.c.b16 %v691, %v687
    %v868 = vpack.c.b16 %v692, %v688
    %v869 = vpack.c.b16 %v693, %v689
    %v870 = vpack.c.b16 %v698, %v694
    %v871 = vpack.c.b16 %v699, %v695
    %v872 = vpack.c.b16 %v700, %v696
    %v873 = vpack.c.b16 %v701, %v697
    %v874 = vpack.c.b16 %v706, %v702
    %v875 = vpack.c.b16 %v707, %v703
    %v876 = vpack.c.b16 %v708, %v704
    %v877 = vpack.c.b16 %v709, %v705
    %v878 = vpack.c.b16 %v714, %v710
    %v879 = vpack.c.b16 %v715, %v711
    %v880 = vpack.c.b16 %v716, %v712
    %v881 = vpack.c.b16 %v717, %v713
    %v882 = vpack.c.b16 %v722, %v718
    %v883 = vpack.c.b16 %v723, %v719
    %v884 = vpack.c.b16 %v724, %v720
    %v885 = vpack.c.b16 %v725, %v721
    %v886 = vpack.c.b16 %v730, %v726
    %v887 = vpack.c.b16 %v731, %v727
    %v888 = vpack.c.b16 %v732, %v728
    %v889 = vpack.c.b16 %v733, %v729
    %v890 = vpack.c.b16 %v734, %v734
    %v891 = vpack.c.b16 %v735, %v735
    %v892 = vpack.c.b16 %v736, %v736
    %v893 = vpack.c.b16 %v737, %v737
    %vm1046 = vcmask 818176
    %v1048 = vsel %vm1046, %v99, 0
    %vm1050 = vcmask 1041408
    %v1052 = vsel %vm1050, %v890, 0
    %v1055 = vsel %vm1050, %v891, 0
    %v1058 = vsel %vm1050, %v892, 0
    %v1061 = vsel %vm1050, %v893, 0
    %1063 = vmatprep.subr.bf16.mxu0 %v739
    %1064 = vmatpush1.bf16.msra.mxu0 %v738
    %1065 = vmatprep.subr.bf16.mxu0 %v743
    %1066 = vmatpush1.bf16.msra.mxu0 %v742
    %1067 = vmatprep.subr.bf16.mxu0 %v747
    %1068 = vmatpush1.bf16.msra.mxu0 %v746
    %1069 = vmatprep.subr.bf16.mxu0 %v751
    %1070 = vmatpush1.bf16.msra.mxu0 %v750
    %1071 = vmatprep.subr.bf16.mxu0 %v755
    %1072 = vmatpush1.bf16.msra.mxu0 %v754
    %1073 = vmatprep.subr.bf16.mxu0 %v759
    %1074 = vmatpush1.bf16.msra.mxu0 %v758
    %1075 = vmatprep.subr.bf16.mxu0 %v763
    %1076 = vmatpush1.bf16.msra.mxu0 %v762
    %1077 = vmatprep.subr.bf16.mxu0 %v767
    %1078 = vmatpush1.bf16.msra.mxu0 %v766
    %1079 = vmatprep.subr.bf16.mxu0 %v771
    %1080 = vmatpush1.bf16.msra.mxu0 %v770
    %1081 = vmatprep.subr.bf16.mxu0 %v775
    %1082 = vmatpush1.bf16.msra.mxu0 %v774
    %1083 = vmatprep.subr.bf16.mxu0 %v779
    %1084 = vmatpush1.bf16.msra.mxu0 %v778
    %1085 = vmatprep.subr.bf16.mxu0 %v783
    %1086 = vmatpush1.bf16.msra.mxu0 %v782
    %1087 = vmatprep.subr.bf16.mxu0 %v787
    %1088 = vmatpush1.bf16.msra.mxu0 %v786
    %1089 = vmatprep.subr.bf16.mxu0 %v791
    %1090 = vmatpush1.bf16.msra.mxu0 %v790
    %1091 = vmatprep.subr.bf16.mxu0 %v795
    %1092 = vmatpush1.bf16.msra.mxu0 %v794
    %1093 = vmatprep.subr.bf16.mxu0 %v799
    %1094 = vmatpush1.bf16.msra.mxu0 %v798
    %1095 = vmatprep.mubr.bf16.mxu0 %v96
    %1096 = vmatmul.mubr.bf16.gmra.mrb[0].mxu0 %v95
    %v1097 = vpop.f32.mrb[0].mxu0
    %v1098 = vadd.f32 %v259, %v1097
    %v1099 = vpop.f32.mrb[0].mxu0
    %v1100 = vadd.f32 %v263, %v1099
    %v1101 = vpop.f32.mrb[0].mxu0
    %v1102 = vpop.f32.mrb[0].mxu0
    %1103 = vdwg.mxu0
    %1104 = vmatprep.subr.bf16.mxu0 %v803
    %1105 = vmatpush1.bf16.msra.mxu0 %v802
    %1106 = vmatprep.subr.bf16.mxu0 %v807
    %1107 = vmatpush1.bf16.msra.mxu0 %v806
    %1108 = vmatprep.subr.bf16.mxu0 %v811
    %1109 = vmatpush1.bf16.msra.mxu0 %v810
    %1110 = vmatprep.subr.bf16.mxu0 %v815
    %1111 = vmatpush1.bf16.msra.mxu0 %v814
    %1112 = vmatprep.subr.bf16.mxu0 %v819
    %1113 = vmatpush1.bf16.msra.mxu0 %v818
    %1114 = vmatprep.subr.bf16.mxu0 %v823
    %1115 = vmatpush1.bf16.msra.mxu0 %v822
    %1116 = vmatprep.subr.bf16.mxu0 %v827
    %1117 = vmatpush1.bf16.msra.mxu0 %v826
    %1118 = vmatprep.subr.bf16.mxu0 %v831
    %1119 = vmatpush1.bf16.msra.mxu0 %v830
    %1120 = vmatprep.subr.bf16.mxu0 %v835
    %1121 = vmatpush1.bf16.msra.mxu0 %v834
    %1122 = vmatprep.subr.bf16.mxu0 %v839
    %1123 = vmatpush1.bf16.msra.mxu0 %v838
    %1124 = vmatprep.subr.bf16.mxu0 %v843
    %1125 = vmatpush1.bf16.msra.mxu0 %v842
    %1126 = vmatprep.subr.bf16.mxu0 %v847
    %1127 = vmatpush1.bf16.msra.mxu0 %v846
    %1128 = vmatprep.subr.bf16.mxu0 %v851
    %1129 = vmatpush1.bf16.msra.mxu0 %v850
    %1130 = vmatprep.subr.bf16.mxu0 %v855
    %1131 = vmatpush1.bf16.msra.mxu0 %v854
    %1132 = vmatprep.subr.bf16.mxu0 %v859
    %1133 = vmatpush1.bf16.msra.mxu0 %v858
    %1134 = vmatprep.subr.bf16.mxu0 %v863
    %1135 = vmatpush1.bf16.msra.mxu0 %v862
    %1136 = vmatprep.mubr.bf16.mxu0 %v98
    %1137 = vmatmul.mubr.bf16.gmra.mrb[0].mxu0 %v97
    %v1138 = vpop.f32.mrb[0].mxu0
    %v1139 = vadd.f32 %v1098, %v1138
    %v1140 = vpop.f32.mrb[0].mxu0
    %v1141 = vadd.f32 %v1100, %v1140
    %v1142 = vpop.f32.mrb[0].mxu0
    %v1143 = vpop.f32.mrb[0].mxu0
    %1144 = vdwg.mxu0
    %1145 = vmatprep.subr.bf16.mxu0 %v867
    %1146 = vmatpush1.bf16.msra.mxu0 %v866
    %1147 = vmatprep.subr.bf16.mxu0 %v871
    %1148 = vmatpush1.bf16.msra.mxu0 %v870
    %1149 = vmatprep.subr.bf16.mxu0 %v875
    %1150 = vmatpush1.bf16.msra.mxu0 %v874
    %1151 = vmatprep.subr.bf16.mxu0 %v879
    %1152 = vmatpush1.bf16.msra.mxu0 %v878
    %1153 = vmatprep.subr.bf16.mxu0 %v883
    %1154 = vmatpush1.bf16.msra.mxu0 %v882
    %1155 = vmatprep.subr.bf16.mxu0 %v887
    %1156 = vmatpush1.bf16.msra.mxu0 %v886
    %1157 = vmatprep.subr.bf16.mxu0 %v1055
    %1158 = vmatpush1.bf16.msra.mxu0 %v1052
    %1159 = vmatprep.subr.bf16.mxu0 0
    %1160 = vmatpush1.bf16.msra.mxu0 0
    %1161 = vmatprep.subr.bf16.mxu0 0
    %1162 = vmatpush1.bf16.msra.mxu0 0
    %1163 = vmatprep.subr.bf16.mxu0 0
    %1164 = vmatpush1.bf16.msra.mxu0 0
    %1165 = vmatprep.subr.bf16.mxu0 0
    %1166 = vmatpush1.bf16.msra.mxu0 0
    %1167 = vmatprep.subr.bf16.mxu0 0
    %1168 = vmatpush1.bf16.msra.mxu0 0
    %1169 = vmatprep.subr.bf16.mxu0 0
    %1170 = vmatpush1.bf16.msra.mxu0 0
    %1171 = vmatprep.subr.bf16.mxu0 0
    %1172 = vmatpush1.bf16.msra.mxu0 0
    %1173 = vmatprep.subr.bf16.mxu0 0
    %1174 = vmatpush1.bf16.msra.mxu0 0
    %1175 = vmatprep.subr.bf16.mxu0 0
    %1176 = vmatpush1.bf16.msra.mxu0 0
    %1177 = vmatprep.mubr.bf16.mxu0 0
    %1178 = vmatmul.mubr.bf16.gmra.mrb[0].mxu0 %v1048
    %v1179 = vpop.f32.mrb[0].mxu0
    %v1180 = vadd.f32 %v1139, %v1179
    %v1181 = vpop.f32.mrb[0].mxu0
    %v1182 = vadd.f32 %v1141, %v1181
    %v1183 = vpop.f32.mrb[0].mxu0
    %v1184 = vpop.f32.mrb[0].mxu0
    %1185 = vdwg.mxu0
    %1186 = vmatprep.subr.bf16.mxu0 %v741
    %1187 = vmatpush1.bf16.msra.mxu0 %v740
    %1188 = vmatprep.subr.bf16.mxu0 %v745
    %1189 = vmatpush1.bf16.msra.mxu0 %v744
    %1190 = vmatprep.subr.bf16.mxu0 %v749
    %1191 = vmatpush1.bf16.msra.mxu0 %v748
    %1192 = vmatprep.subr.bf16.mxu0 %v753
    %1193 = vmatpush1.bf16.msra.mxu0 %v752
    %1194 = vmatprep.subr.bf16.mxu0 %v757
    %1195 = vmatpush1.bf16.msra.mxu0 %v756
    %1196 = vmatprep.subr.bf16.mxu0 %v761
    %1197 = vmatpush1.bf16.msra.mxu0 %v760
    %1198 = vmatprep.subr.bf16.mxu0 %v765
    %1199 = vmatpush1.bf16.msra.mxu0 %v764
    %1200 = vmatprep.subr.bf16.mxu0 %v769
    %1201 = vmatpush1.bf16.msra.mxu0 %v768
    %1202 = vmatprep.subr.bf16.mxu0 %v773
    %1203 = vmatpush1.bf16.msra.mxu0 %v772
    %1204 = vmatprep.subr.bf16.mxu0 %v777
    %1205 = vmatpush1.bf16.msra.mxu0 %v776
    %1206 = vmatprep.subr.bf16.mxu0 %v781
    %1207 = vmatpush1.bf16.msra.mxu0 %v780
    %1208 = vmatprep.subr.bf16.mxu0 %v785
    %1209 = vmatpush1.bf16.msra.mxu0 %v784
    %1210 = vmatprep.subr.bf16.mxu0 %v789
    %1211 = vmatpush1.bf16.msra.mxu0 %v788
    %1212 = vmatprep.subr.bf16.mxu0 %v793
    %1213 = vmatpush1.bf16.msra.mxu0 %v792
    %1214 = vmatprep.subr.bf16.mxu0 %v797
    %1215 = vmatpush1.bf16.msra.mxu0 %v796
    %1216 = vmatprep.subr.bf16.mxu0 %v801
    %1217 = vmatpush1.bf16.msra.mxu0 %v800
    %1218 = vmatprep.mubr.bf16.mxu0 %v96
    %1219 = vmatmul.mubr.bf16.gmra.mrb[0].mxu0 %v95
    %v1220 = vpop.f32.mrb[0].mxu0
    %v1221 = vadd.f32 %v267, %v1220
    %v1222 = vpop.f32.mrb[0].mxu0
    %v1223 = vadd.f32 %v271, %v1222
    %v1224 = vpop.f32.mrb[0].mxu0
    %v1225 = vpop.f32.mrb[0].mxu0
    %1226 = vdwg.mxu0
    %1227 = vmatprep.subr.bf16.mxu0 %v805
    %1228 = vmatpush1.bf16.msra.mxu0 %v804
    %1229 = vmatprep.subr.bf16.mxu0 %v809
    %1230 = vmatpush1.bf16.msra.mxu0 %v808
    %1231 = vmatprep.subr.bf16.mxu0 %v813
    %1232 = vmatpush1.bf16.msra.mxu0 %v812
    %1233 = vmatprep.subr.bf16.mxu0 %v817
    %1234 = vmatpush1.bf16.msra.mxu0 %v816
    %1235 = vmatprep.subr.bf16.mxu0 %v821
    %1236 = vmatpush1.bf16.msra.mxu0 %v820
    %1237 = vmatprep.subr.bf16.mxu0 %v825
    %1238 = vmatpush1.bf16.msra.mxu0 %v824
    %1239 = vmatprep.subr.bf16.mxu0 %v829
    %1240 = vmatpush1.bf16.msra.mxu0 %v828
    %1241 = vmatprep.subr.bf16.mxu0 %v833
    %1242 = vmatpush1.bf16.msra.mxu0 %v832
    %1243 = vmatprep.subr.bf16.mxu0 %v837
    %1244 = vmatpush1.bf16.msra.mxu0 %v836
    %1245 = vmatprep.subr.bf16.mxu0 %v841
    %1246 = vmatpush1.bf16.msra.mxu0 %v840
    %1247 = vmatprep.subr.bf16.mxu0 %v845
    %1248 = vmatpush1.bf16.msra.mxu0 %v844
    %1249 = vmatprep.subr.bf16.mxu0 %v849
    %1250 = vmatpush1.bf16.msra.mxu0 %v848
    %1251 = vmatprep.subr.bf16.mxu0 %v853
    %1252 = vmatpush1.bf16.msra.mxu0 %v852
    %1253 = vmatprep.subr.bf16.mxu0 %v857
    %1254 = vmatpush1.bf16.msra.mxu0 %v856
    %1255 = vmatprep.subr.bf16.mxu0 %v861
    %1256 = vmatpush1.bf16.msra.mxu0 %v860
    %1257 = vmatprep.subr.bf16.mxu0 %v865
    %1258 = vmatpush1.bf16.msra.mxu0 %v864
    %1259 = vmatprep.mubr.bf16.mxu0 %v98
    %1260 = vmatmul.mubr.bf16.gmra.mrb[0].mxu0 %v97
    %v1261 = vpop.f32.mrb[0].mxu0
    %v1262 = vadd.f32 %v1221, %v1261
    %v1263 = vpop.f32.mrb[0].mxu0
    %v1264 = vadd.f32 %v1223, %v1263
    %v1265 = vpop.f32.mrb[0].mxu0
    %v1266 = vpop.f32.mrb[0].mxu0
    %1267 = vdwg.mxu0
    %1268 = vmatprep.subr.bf16.mxu0 %v869
    %1269 = vmatpush1.bf16.msra.mxu0 %v868
    %1270 = vmatprep.subr.bf16.mxu0 %v873
    %1271 = vmatpush1.bf16.msra.mxu0 %v872
    %1272 = vmatprep.subr.bf16.mxu0 %v877
    %1273 = vmatpush1.bf16.msra.mxu0 %v876
    %1274 = vmatprep.subr.bf16.mxu0 %v881
    %1275 = vmatpush1.bf16.msra.mxu0 %v880
    %1276 = vmatprep.subr.bf16.mxu0 %v885
    %1277 = vmatpush1.bf16.msra.mxu0 %v884
    %1278 = vmatprep.subr.bf16.mxu0 %v889
    %1279 = vmatpush1.bf16.msra.mxu0 %v888
    %1280 = vmatprep.subr.bf16.mxu0 %v1061
    %1281 = vmatpush1.bf16.msra.mxu0 %v1058
    %1282 = vmatprep.subr.bf16.mxu0 0
    %1283 = vmatpush1.bf16.msra.mxu0 0
    %1284 = vmatprep.subr.bf16.mxu0 0
    %1285 = vmatpush1.bf16.msra.mxu0 0
    %1286 = vmatprep.subr.bf16.mxu0 0
    %1287 = vmatpush1.bf16.msra.mxu0 0
    %1288 = vmatprep.subr.bf16.mxu0 0
    %1289 = vmatpush1.bf16.msra.mxu0 0
    %1290 = vmatprep.subr.bf16.mxu0 0
    %1291 = vmatpush1.bf16.msra.mxu0 0
    %1292 = vmatprep.subr.bf16.mxu0 0
    %1293 = vmatpush1.bf16.msra.mxu0 0
    %1294 = vmatprep.subr.bf16.mxu0 0
    %1295 = vmatpush1.bf16.msra.mxu0 0
    %1296 = vmatprep.subr.bf16.mxu0 0
    %1297 = vmatpush1.bf16.msra.mxu0 0
    %1298 = vmatprep.subr.bf16.mxu0 0
    %1299 = vmatpush1.bf16.msra.mxu0 0
    %1300 = vmatprep.mubr.bf16.mxu0 0
    %1301 = vmatmul.mubr.bf16.gmra.mrb[0].mxu0 %v1048
    %v1302 = vpop.f32.mrb[0].mxu0
    %v1303 = vadd.f32 %v1262, %v1302
    %v1304 = vpop.f32.mrb[0].mxu0
    %v1305 = vadd.f32 %v1264, %v1304
    %v1306 = vpop.f32.mrb[0].mxu0
    %v1307 = vpop.f32.mrb[0].mxu0
    %1308 = vdwg.mxu0
    %v1309 = vmax.f32 %v1180, 0.0
    %v1310 = vmax.f32 %v1182, 0.0
    %v1311 = vmax.f32 %v1303, 0.0
    %v1312 = vmax.f32 %v1305, 0.0
    %v1313 = vpack.c.bf16 %v1309, %v1309
    %v1314 = vpack.c.bf16 %v1310, %v1310
    %v1315 = vpack.c.bf16 %v1311, %v1311
    %v1316 = vpack.c.bf16 %v1312, %v1312
    %v1317 = vld [vmem:[#allocation5] sm:$0xff]
    %v1318 = vld [vmem:[#allocation5 + $0x8] sm:$0xff]
    %v1319 = vld [vmem:[#allocation5 + $0x10] sm:$0xff]
    %v1320 = vld [vmem:[#allocation5 + $0x18] sm:$0xff]
    %v1321 = vld [vmem:[#allocation5 + $0x20] sm:$0xff]
    %v1322 = vld [vmem:[#allocation5 + $0x28] sm:$0xff]
    %v1323 = vld [vmem:[#allocation5 + $0x30] sm:$0xff]
    %v1324 = vld [vmem:[#allocation5 + $0x38] sm:$0xff]
    %v1325 = vld [vmem:[#allocation5 + $0x40] sm:$0xff]
    %v1326 = vld [vmem:[#allocation5 + $0x48] sm:$0xff]
    %v1327 = vld [vmem:[#allocation5 + $0x50] sm:$0xff]
    %v1328 = vld [vmem:[#allocation5 + $0x58] sm:$0xff]
    %v1329 = vld [vmem:[#allocation5 + $0x60] sm:$0xff]
    %v1330 = vld [vmem:[#allocation5 + $0x68] sm:$0xff]
    %v1331 = vld [vmem:[#allocation5 + $0x70] sm:$0xff]
    %v1332 = vld [vmem:[#allocation5 + $0x78] sm:$0xff]
    %v1333 = vld [vmem:[#allocation5 + $0x80] sm:$0xff]
    %v1334 = vld [vmem:[#allocation5 + $0x88] sm:$0xff]
    %v1335 = vld [vmem:[#allocation5 + $0x90] sm:$0xff]
    %v1336 = vld [vmem:[#allocation5 + $0x98] sm:$0xff]
    %v1337 = vld [vmem:[#allocation5 + $0xa0] sm:$0xff]
    %v1338 = vld [vmem:[#allocation5 + $0xa8] sm:$0xff]
    %v1339 = vld [vmem:[#allocation5 + $0xb0] sm:$0xff]
    %v1340 = vld [vmem:[#allocation5 + $0xb8] sm:$0xff]
    %v1341 = vld [vmem:[#allocation5 + $0xc0] sm:$0xff]
    %v1342 = vld [vmem:[#allocation5 + $0xc8] sm:$0xff]
    %v1343 = vld [vmem:[#allocation5 + $0xd0] sm:$0xff]
    %v1344 = vld [vmem:[#allocation5 + $0xd8] sm:$0xff]
    %v1345 = vld [vmem:[#allocation5 + $0xe0] sm:$0xff]
    %v1346 = vld [vmem:[#allocation5 + $0xe8] sm:$0xff]
    %v1347 = vld [vmem:[#allocation5 + $0xf0] sm:$0xff]
    %v1348 = vld [vmem:[#allocation5 + $0xf8] sm:$0xff]
    %v1349 = vld [vmem:[#allocation5 + $0x100] sm:$0xff]
    %v1350 = vld [vmem:[#allocation5 + $0x108] sm:$0xff]
    %v1351 = vld [vmem:[#allocation5 + $0x110] sm:$0xff]
    %v1352 = vld [vmem:[#allocation5 + $0x118] sm:$0xff]
    %v1353 = vld [vmem:[#allocation5 + $0x120] sm:$0xff]
    %v1354 = vld [vmem:[#allocation5 + $0x128] sm:$0xff]
    %v1355 = vld [vmem:[#allocation5 + $0x130] sm:$0xff]
    %v1356 = vld [vmem:[#allocation5 + $0x138] sm:$0xff]
    %v1357 = vld [vmem:[#allocation5 + $0x140] sm:$0xff]
    %v1358 = vld [vmem:[#allocation5 + $0x148] sm:$0xff]
    %v1359 = vld [vmem:[#allocation5 + $0x150] sm:$0xff]
    %v1360 = vld [vmem:[#allocation5 + $0x158] sm:$0xff]
    %v1361 = vld [vmem:[#allocation5 + $0x160] sm:$0xff]
    %v1362 = vld [vmem:[#allocation5 + $0x168] sm:$0xff]
    %v1363 = vld [vmem:[#allocation5 + $0x170] sm:$0xff]
    %v1364 = vld [vmem:[#allocation5 + $0x178] sm:$0xff]
    %v1365 = vld [vmem:[#allocation5 + $0x180] sm:$0xff]
    %v1366 = vld [vmem:[#allocation5 + $0x188] sm:$0xff]
    %v1367 = vld [vmem:[#allocation5 + $0x190] sm:$0xff]
    %v1368 = vld [vmem:[#allocation5 + $0x198] sm:$0xff]
    %v1369 = vld [vmem:[#allocation5 + $0x1a0] sm:$0xff]
    %v1370 = vld [vmem:[#allocation5 + $0x1a8] sm:$0xff]
    %v1371 = vld [vmem:[#allocation5 + $0x1b0] sm:$0xff]
    %v1372 = vld [vmem:[#allocation5 + $0x1b8] sm:$0xff]
    %v1373 = vld [vmem:[#allocation5 + $0x1c0] sm:$0xff]
    %v1374 = vld [vmem:[#allocation5 + $0x1c8] sm:$0xff]
    %v1375 = vld [vmem:[#allocation5 + $0x1d0] sm:$0xff]
    %v1376 = vld [vmem:[#allocation5 + $0x1d8] sm:$0xff]
    %v1377 = vld [vmem:[#allocation5 + $0x1e0] sm:$0xff]
    %v1378 = vld [vmem:[#allocation5 + $0x1e8] sm:$0xff]
    %v1379 = vld [vmem:[#allocation5 + $0x1f0] sm:$0xff]
    %v1380 = vld [vmem:[#allocation5 + $0x1f8] sm:$0xff]
    %v1381 = vld [vmem:[%s4] sm:$0x3]
    %v1383 = vlaneseq
    %v1384 = vshrl.u32 %v1383, 7
    %v1385 = vsub.s32 0, %v1384
    %v1386 = vrot.slane %v1381, %v1385
    %v1387 = vlaneseq
    %v1388 = vshrl.u32 %v1387, 7
    %v1389 = vsub.s32 1, %v1388
    %v1390 = vrot.slane %v1381, %v1389
    %v1457 = vunpack.c.l.b16 %v1317
    %v1458 = vunpack.c.h.b16 %v1317
    %v1459 = vunpack.c.l.b16 %v1318
    %v1460 = vunpack.c.h.b16 %v1318
    %v1461 = vunpack.c.l.b16 %v1319
    %v1462 = vunpack.c.h.b16 %v1319
    %v1463 = vunpack.c.l.b16 %v1320
    %v1464 = vunpack.c.h.b16 %v1320
    %v1465 = vunpack.c.l.b16 %v1321
    %v1466 = vunpack.c.h.b16 %v1321
    %v1467 = vunpack.c.l.b16 %v1322
    %v1468 = vunpack.c.h.b16 %v1322
    %v1469 = vunpack.c.l.b16 %v1323
    %v1470 = vunpack.c.h.b16 %v1323
    %v1471 = vunpack.c.l.b16 %v1324
    %v1472 = vunpack.c.h.b16 %v1324
    %v1473 = vunpack.c.l.b16 %v1325
    %v1474 = vunpack.c.h.b16 %v1325
    %v1475 = vunpack.c.l.b16 %v1326
    %v1476 = vunpack.c.h.b16 %v1326
    %v1477 = vunpack.c.l.b16 %v1327
    %v1478 = vunpack.c.h.b16 %v1327
    %v1479 = vunpack.c.l.b16 %v1328
    %v1480 = vunpack.c.h.b16 %v1328
    %v1481 = vunpack.c.l.b16 %v1329
    %v1482 = vunpack.c.h.b16 %v1329
    %v1483 = vunpack.c.l.b16 %v1330
    %v1484 = vunpack.c.h.b16 %v1330
    %v1485 = vunpack.c.l.b16 %v1331
    %v1486 = vunpack.c.h.b16 %v1331
    %v1487 = vunpack.c.l.b16 %v1332
    %v1488 = vunpack.c.h.b16 %v1332
    %v1489 = vunpack.c.l.b16 %v1333
    %v1490 = vunpack.c.h.b16 %v1333
    %v1491 = vunpack.c.l.b16 %v1334
    %v1492 = vunpack.c.h.b16 %v1334
    %v1493 = vunpack.c.l.b16 %v1335
    %v1494 = vunpack.c.h.b16 %v1335
    %v1495 = vunpack.c.l.b16 %v1336
    %v1496 = vunpack.c.h.b16 %v1336
    %v1497 = vunpack.c.l.b16 %v1337
    %v1498 = vunpack.c.h.b16 %v1337
    %v1499 = vunpack.c.l.b16 %v1338
    %v1500 = vunpack.c.h.b16 %v1338
    %v1501 = vunpack.c.l.b16 %v1339
    %v1502 = vunpack.c.h.b16 %v1339
    %v1503 = vunpack.c.l.b16 %v1340
    %v1504 = vunpack.c.h.b16 %v1340
    %v1505 = vunpack.c.l.b16 %v1341
    %v1506 = vunpack.c.h.b16 %v1341
    %v1507 = vunpack.c.l.b16 %v1342
    %v1508 = vunpack.c.h.b16 %v1342
    %v1509 = vunpack.c.l.b16 %v1343
    %v1510 = vunpack.c.h.b16 %v1343
    %v1511 = vunpack.c.l.b16 %v1344
    %v1512 = vunpack.c.h.b16 %v1344
    %v1513 = vunpack.c.l.b16 %v1345
    %v1514 = vunpack.c.h.b16 %v1345
    %v1515 = vunpack.c.l.b16 %v1346
    %v1516 = vunpack.c.h.b16 %v1346
    %v1517 = vunpack.c.l.b16 %v1347
    %v1518 = vunpack.c.h.b16 %v1347
    %v1519 = vunpack.c.l.b16 %v1348
    %v1520 = vunpack.c.h.b16 %v1348
    %v1521 = vunpack.c.l.b16 %v1349
    %v1522 = vunpack.c.h.b16 %v1349
    %v1523 = vunpack.c.l.b16 %v1350
    %v1524 = vunpack.c.h.b16 %v1350
    %v1525 = vunpack.c.l.b16 %v1351
    %v1526 = vunpack.c.h.b16 %v1351
    %v1527 = vunpack.c.l.b16 %v1352
    %v1528 = vunpack.c.h.b16 %v1352
    %v1529 = vunpack.c.l.b16 %v1353
    %v1530 = vunpack.c.h.b16 %v1353
    %v1531 = vunpack.c.l.b16 %v1354
    %v1532 = vunpack.c.h.b16 %v1354
    %v1533 = vunpack.c.l.b16 %v1355
    %v1534 = vunpack.c.h.b16 %v1355
    %v1535 = vunpack.c.l.b16 %v1356
    %v1536 = vunpack.c.h.b16 %v1356
    %v1537 = vunpack.c.l.b16 %v1357
    %v1538 = vunpack.c.h.b16 %v1357
    %v1539 = vunpack.c.l.b16 %v1358
    %v1540 = vunpack.c.h.b16 %v1358
    %v1541 = vunpack.c.l.b16 %v1359
    %v1542 = vunpack.c.h.b16 %v1359
    %v1543 = vunpack.c.l.b16 %v1360
    %v1544 = vunpack.c.h.b16 %v1360
    %v1545 = vunpack.c.l.b16 %v1361
    %v1546 = vunpack.c.h.b16 %v1361
    %v1547 = vunpack.c.l.b16 %v1362
    %v1548 = vunpack.c.h.b16 %v1362
    %v1549 = vunpack.c.l.b16 %v1363
    %v1550 = vunpack.c.h.b16 %v1363
    %v1551 = vunpack.c.l.b16 %v1364
    %v1552 = vunpack.c.h.b16 %v1364
    %v1553 = vunpack.c.l.b16 %v1365
    %v1554 = vunpack.c.h.b16 %v1365
    %v1555 = vunpack.c.l.b16 %v1366
    %v1556 = vunpack.c.h.b16 %v1366
    %v1557 = vunpack.c.l.b16 %v1367
    %v1558 = vunpack.c.h.b16 %v1367
    %v1559 = vunpack.c.l.b16 %v1368
    %v1560 = vunpack.c.h.b16 %v1368
    %v1561 = vunpack.c.l.b16 %v1369
    %v1562 = vunpack.c.h.b16 %v1369
    %v1563 = vunpack.c.l.b16 %v1370
    %v1564 = vunpack.c.h.b16 %v1370
    %v1565 = vunpack.c.l.b16 %v1371
    %v1566 = vunpack.c.h.b16 %v1371
    %v1567 = vunpack.c.l.b16 %v1372
    %v1568 = vunpack.c.h.b16 %v1372
    %v1569 = vunpack.c.l.b16 %v1373
    %v1570 = vunpack.c.h.b16 %v1373
    %v1571 = vunpack.c.l.b16 %v1374
    %v1572 = vunpack.c.h.b16 %v1374
    %v1573 = vunpack.c.l.b16 %v1375
    %v1574 = vunpack.c.h.b16 %v1375
    %v1575 = vunpack.c.l.b16 %v1376
    %v1576 = vunpack.c.h.b16 %v1376
    %v1577 = vunpack.c.l.b16 %v1377
    %v1578 = vunpack.c.h.b16 %v1377
    %v1579 = vunpack.c.l.b16 %v1378
    %v1580 = vunpack.c.h.b16 %v1378
    %v1581 = vunpack.c.l.b16 %v1379
    %v1582 = vunpack.c.h.b16 %v1379
    %v1583 = vunpack.c.l.b16 %v1380
    %v1584 = vunpack.c.h.b16 %v1380
    %v1585 = vpack.c.b16 %v1459, %v1457
    %v1586 = vpack.c.b16 %v1460, %v1458
    %v1587 = vpack.c.b16 %v1463, %v1461
    %v1588 = vpack.c.b16 %v1464, %v1462
    %v1589 = vpack.c.b16 %v1467, %v1465
    %v1590 = vpack.c.b16 %v1468, %v1466
    %v1591 = vpack.c.b16 %v1471, %v1469
    %v1592 = vpack.c.b16 %v1472, %v1470
    %v1593 = vpack.c.b16 %v1475, %v1473
    %v1594 = vpack.c.b16 %v1476, %v1474
    %v1595 = vpack.c.b16 %v1479, %v1477
    %v1596 = vpack.c.b16 %v1480, %v1478
    %v1597 = vpack.c.b16 %v1483, %v1481
    %v1598 = vpack.c.b16 %v1484, %v1482
    %v1599 = vpack.c.b16 %v1487, %v1485
    %v1600 = vpack.c.b16 %v1488, %v1486
    %v1601 = vpack.c.b16 %v1491, %v1489
    %v1602 = vpack.c.b16 %v1492, %v1490
    %v1603 = vpack.c.b16 %v1495, %v1493
    %v1604 = vpack.c.b16 %v1496, %v1494
    %v1605 = vpack.c.b16 %v1499, %v1497
    %v1606 = vpack.c.b16 %v1500, %v1498
    %v1607 = vpack.c.b16 %v1503, %v1501
    %v1608 = vpack.c.b16 %v1504, %v1502
    %v1609 = vpack.c.b16 %v1507, %v1505
    %v1610 = vpack.c.b16 %v1508, %v1506
    %v1611 = vpack.c.b16 %v1511, %v1509
    %v1612 = vpack.c.b16 %v1512, %v1510
    %v1613 = vpack.c.b16 %v1515, %v1513
    %v1614 = vpack.c.b16 %v1516, %v1514
    %v1615 = vpack.c.b16 %v1519, %v1517
    %v1616 = vpack.c.b16 %v1520, %v1518
    %v1617 = vpack.c.b16 %v1523, %v1521
    %v1618 = vpack.c.b16 %v1524, %v1522
    %v1619 = vpack.c.b16 %v1527, %v1525
    %v1620 = vpack.c.b16 %v1528, %v1526
    %v1621 = vpack.c.b16 %v1531, %v1529
    %v1622 = vpack.c.b16 %v1532, %v1530
    %v1623 = vpack.c.b16 %v1535, %v1533
    %v1624 = vpack.c.b16 %v1536, %v1534
    %v1625 = vpack.c.b16 %v1539, %v1537
    %v1626 = vpack.c.b16 %v1540, %v1538
    %v1627 = vpack.c.b16 %v1543, %v1541
    %v1628 = vpack.c.b16 %v1544, %v1542
    %v1629 = vpack.c.b16 %v1547, %v1545
    %v1630 = vpack.c.b16 %v1548, %v1546
    %v1631 = vpack.c.b16 %v1551, %v1549
    %v1632 = vpack.c.b16 %v1552, %v1550
    %v1633 = vpack.c.b16 %v1555, %v1553
    %v1634 = vpack.c.b16 %v1556, %v1554
    %v1635 = vpack.c.b16 %v1559, %v1557
    %v1636 = vpack.c.b16 %v1560, %v1558
    %v1637 = vpack.c.b16 %v1563, %v1561
    %v1638 = vpack.c.b16 %v1564, %v1562
    %v1639 = vpack.c.b16 %v1567, %v1565
    %v1640 = vpack.c.b16 %v1568, %v1566
    %v1641 = vpack.c.b16 %v1571, %v1569
    %v1642 = vpack.c.b16 %v1572, %v1570
    %v1643 = vpack.c.b16 %v1575, %v1573
    %v1644 = vpack.c.b16 %v1576, %v1574
    %v1645 = vpack.c.b16 %v1579, %v1577
    %v1646 = vpack.c.b16 %v1580, %v1578
    %v1647 = vpack.c.b16 %v1583, %v1581
    %v1648 = vpack.c.b16 %v1584, %v1582
    %1713 = vmatprep.subr.bf16.mxu0 %v1586
    %1714 = vmatpush1.bf16.msra.mxu0 %v1585
    %1715 = vmatprep.subr.bf16.mxu0 %v1588
    %1716 = vmatpush1.bf16.msra.mxu0 %v1587
    %1717 = vmatprep.subr.bf16.mxu0 %v1590
    %1718 = vmatpush1.bf16.msra.mxu0 %v1589
    %1719 = vmatprep.subr.bf16.mxu0 %v1592
    %1720 = vmatpush1.bf16.msra.mxu0 %v1591
    %1721 = vmatprep.subr.bf16.mxu0 %v1594
    %1722 = vmatpush1.bf16.msra.mxu0 %v1593
    %1723 = vmatprep.subr.bf16.mxu0 %v1596
    %1724 = vmatpush1.bf16.msra.mxu0 %v1595
    %1725 = vmatprep.subr.bf16.mxu0 %v1598
    %1726 = vmatpush1.bf16.msra.mxu0 %v1597
    %1727 = vmatprep.subr.bf16.mxu0 %v1600
    %1728 = vmatpush1.bf16.msra.mxu0 %v1599
    %1729 = vmatprep.subr.bf16.mxu0 %v1602
    %1730 = vmatpush1.bf16.msra.mxu0 %v1601
    %1731 = vmatprep.subr.bf16.mxu0 %v1604
    %1732 = vmatpush1.bf16.msra.mxu0 %v1603
    %1733 = vmatprep.subr.bf16.mxu0 %v1606
    %1734 = vmatpush1.bf16.msra.mxu0 %v1605
    %1735 = vmatprep.subr.bf16.mxu0 %v1608
    %1736 = vmatpush1.bf16.msra.mxu0 %v1607
    %1737 = vmatprep.subr.bf16.mxu0 %v1610
    %1738 = vmatpush1.bf16.msra.mxu0 %v1609
    %1739 = vmatprep.subr.bf16.mxu0 %v1612
    %1740 = vmatpush1.bf16.msra.mxu0 %v1611
    %1741 = vmatprep.subr.bf16.mxu0 %v1614
    %1742 = vmatpush1.bf16.msra.mxu0 %v1613
    %1743 = vmatprep.subr.bf16.mxu0 %v1616
    %1744 = vmatpush1.bf16.msra.mxu0 %v1615
    %1745 = vmatprep.mubr.bf16.mxu0 %v1314
    %1746 = vmatmul.mubr.bf16.gmra.mrb[0].mxu0 %v1313
    %v1747 = vpop.f32.mrb[0].mxu0
    %v1748 = vadd.f32 %v1386, %v1747
    %v1749 = vpop.f32.mrb[0].mxu0
    %v1750 = vadd.f32 %v1390, %v1749
    %v1751 = vpop.f32.mrb[0].mxu0
    %v1752 = vpop.f32.mrb[0].mxu0
    %1753 = vdwg.mxu0
    %1754 = vmatprep.subr.bf16.mxu0 %v1618
    %1755 = vmatpush1.bf16.msra.mxu0 %v1617
    %1756 = vmatprep.subr.bf16.mxu0 %v1620
    %1757 = vmatpush1.bf16.msra.mxu0 %v1619
    %1758 = vmatprep.subr.bf16.mxu0 %v1622
    %1759 = vmatpush1.bf16.msra.mxu0 %v1621
    %1760 = vmatprep.subr.bf16.mxu0 %v1624
    %1761 = vmatpush1.bf16.msra.mxu0 %v1623
    %1762 = vmatprep.subr.bf16.mxu0 %v1626
    %1763 = vmatpush1.bf16.msra.mxu0 %v1625
    %1764 = vmatprep.subr.bf16.mxu0 %v1628
    %1765 = vmatpush1.bf16.msra.mxu0 %v1627
    %1766 = vmatprep.subr.bf16.mxu0 %v1630
    %1767 = vmatpush1.bf16.msra.mxu0 %v1629
    %1768 = vmatprep.subr.bf16.mxu0 %v1632
    %1769 = vmatpush1.bf16.msra.mxu0 %v1631
    %1770 = vmatprep.subr.bf16.mxu0 %v1634
    %1771 = vmatpush1.bf16.msra.mxu0 %v1633
    %1772 = vmatprep.subr.bf16.mxu0 %v1636
    %1773 = vmatpush1.bf16.msra.mxu0 %v1635
    %1774 = vmatprep.subr.bf16.mxu0 %v1638
    %1775 = vmatpush1.bf16.msra.mxu0 %v1637
    %1776 = vmatprep.subr.bf16.mxu0 %v1640
    %1777 = vmatpush1.bf16.msra.mxu0 %v1639
    %1778 = vmatprep.subr.bf16.mxu0 %v1642
    %1779 = vmatpush1.bf16.msra.mxu0 %v1641
    %1780 = vmatprep.subr.bf16.mxu0 %v1644
    %1781 = vmatpush1.bf16.msra.mxu0 %v1643
    %1782 = vmatprep.subr.bf16.mxu0 %v1646
    %1783 = vmatpush1.bf16.msra.mxu0 %v1645
    %1784 = vmatprep.subr.bf16.mxu0 %v1648
    %1785 = vmatpush1.bf16.msra.mxu0 %v1647
    %1786 = vmatprep.mubr.bf16.mxu0 %v1316
    %1787 = vmatmul.mubr.bf16.gmra.mrb[0].mxu0 %v1315
    %v1788 = vpop.f32.mrb[0].mxu0
    %v1789 = vadd.f32 %v1748, %v1788
    %v1790 = vpop.f32.mrb[0].mxu0
    %v1791 = vadd.f32 %v1750, %v1790
    %v1792 = vpop.f32.mrb[0].mxu0
    %v1793 = vpop.f32.mrb[0].mxu0
    %1794 = vdwg.mxu0
    %v1795 = vmax.f32 %v1789, 0.0
    %v1796 = vmax.f32 %v1791, 0.0
    %v1797 = vpack.c.bf16 %v1795, %v1795
    %v1798 = vpack.c.bf16 %v1796, %v1796
    %v1799 = vld [vmem:[%s5] sm:$0xf]
    %v1800 = vld [vmem:[%s5 + $0x4] sm:$0xf]
    %v1801 = vld [vmem:[%s5 + $0x8] sm:$0xf]
    %v1802 = vld [vmem:[%s5 + $0xc] sm:$0xf]
    %v1803 = vld [vmem:[%s5 + $0x10] sm:$0xf]
    %v1804 = vld [vmem:[%s5 + $0x14] sm:$0xf]
    %v1805 = vld [vmem:[%s5 + $0x18] sm:$0xf]
    %v1806 = vld [vmem:[%s5 + $0x1c] sm:$0xf]
    %v1807 = vld [vmem:[%s5 + $0x20] sm:$0xf]
    %v1808 = vld [vmem:[%s5 + $0x24] sm:$0xf]
    %v1809 = vld [vmem:[%s5 + $0x28] sm:$0xf]
    %v1810 = vld [vmem:[%s5 + $0x2c] sm:$0xf]
    %v1811 = vld [vmem:[%s5 + $0x30] sm:$0xf]
    %v1812 = vld [vmem:[%s5 + $0x34] sm:$0xf]
    %v1813 = vld [vmem:[%s5 + $0x38] sm:$0xf]
    %v1814 = vld [vmem:[%s5 + $0x3c] sm:$0xf]
    %v1815 = vld [vmem:[%s5 + $0x40] sm:$0xf]
    %v1816 = vld [vmem:[%s5 + $0x44] sm:$0xf]
    %v1817 = vld [vmem:[%s5 + $0x48] sm:$0xf]
    %v1818 = vld [vmem:[%s5 + $0x4c] sm:$0xf]
    %v1819 = vld [vmem:[%s5 + $0x50] sm:$0xf]
    %v1820 = vld [vmem:[%s5 + $0x54] sm:$0xf]
    %v1821 = vld [vmem:[%s5 + $0x58] sm:$0xf]
    %v1822 = vld [vmem:[%s5 + $0x5c] sm:$0xf]
    %v1823 = vld [vmem:[%s5 + $0x60] sm:$0xf]
    %v1824 = vld [vmem:[%s5 + $0x64] sm:$0xf]
    %v1825 = vld [vmem:[%s5 + $0x68] sm:$0xf]
    %v1826 = vld [vmem:[%s5 + $0x6c] sm:$0xf]
    %v1827 = vld [vmem:[%s5 + $0x70] sm:$0xf]
    %v1828 = vld [vmem:[%s5 + $0x74] sm:$0xf]
    %v1829 = vld [vmem:[%s5 + $0x78] sm:$0xf]
    %v1830 = vld [vmem:[%s5 + $0x7c] sm:$0xf]
    %v1831 = vld [vmem:[%s6] sm:$0x1]
    %v1833 = vlaneseq
    %v1834 = vshrl.u32 %v1833, 7
    %v1835 = vsub.s32 0, %v1834
    %v1836 = vrot.slane %v1831, %v1835
    %v1870 = vunpack.c.l.b16 %v1799
    %v1871 = vunpack.c.l.b16 %v1800
    %v1872 = vunpack.c.l.b16 %v1801
    %v1873 = vunpack.c.l.b16 %v1802
    %v1874 = vunpack.c.l.b16 %v1803
    %v1875 = vunpack.c.l.b16 %v1804
    %v1876 = vunpack.c.l.b16 %v1805
    %v1877 = vunpack.c.l.b16 %v1806
    %v1878 = vunpack.c.l.b16 %v1807
    %v1879 = vunpack.c.l.b16 %v1808
    %v1880 = vunpack.c.l.b16 %v1809
    %v1881 = vunpack.c.l.b16 %v1810
    %v1882 = vunpack.c.l.b16 %v1811
    %v1883 = vunpack.c.l.b16 %v1812
    %v1884 = vunpack.c.l.b16 %v1813
    %v1885 = vunpack.c.l.b16 %v1814
    %v1886 = vunpack.c.l.b16 %v1815
    %v1887 = vunpack.c.l.b16 %v1816
    %v1888 = vunpack.c.l.b16 %v1817
    %v1889 = vunpack.c.l.b16 %v1818
    %v1890 = vunpack.c.l.b16 %v1819
    %v1891 = vunpack.c.l.b16 %v1820
    %v1892 = vunpack.c.l.b16 %v1821
    %v1893 = vunpack.c.l.b16 %v1822
    %v1894 = vunpack.c.l.b16 %v1823
    %v1895 = vunpack.c.l.b16 %v1824
    %v1896 = vunpack.c.l.b16 %v1825
    %v1897 = vunpack.c.l.b16 %v1826
    %v1898 = vunpack.c.l.b16 %v1827
    %v1899 = vunpack.c.l.b16 %v1828
    %v1900 = vunpack.c.l.b16 %v1829
    %v1901 = vunpack.c.l.b16 %v1830
    %v1902 = vpack.c.b16 %v1871, %v1870
    %v1903 = vpack.c.b16 %v1873, %v1872
    %v1904 = vpack.c.b16 %v1875, %v1874
    %v1905 = vpack.c.b16 %v1877, %v1876
    %v1906 = vpack.c.b16 %v1879, %v1878
    %v1907 = vpack.c.b16 %v1881, %v1880
    %v1908 = vpack.c.b16 %v1883, %v1882
    %v1909 = vpack.c.b16 %v1885, %v1884
    %v1910 = vpack.c.b16 %v1887, %v1886
    %v1911 = vpack.c.b16 %v1889, %v1888
    %v1912 = vpack.c.b16 %v1891, %v1890
    %v1913 = vpack.c.b16 %v1893, %v1892
    %v1914 = vpack.c.b16 %v1895, %v1894
    %v1915 = vpack.c.b16 %v1897, %v1896
    %v1916 = vpack.c.b16 %v1899, %v1898
    %v1917 = vpack.c.b16 %v1901, %v1900
    %1934 = vmatprep.subr.bf16.mxu0 0
    %1935 = vmatpush1.bf16.msra.mxu0 %v1902
    %1936 = vmatprep.subr.bf16.mxu0 0
    %1937 = vmatpush1.bf16.msra.mxu0 %v1903
    %1938 = vmatprep.subr.bf16.mxu0 0
    %1939 = vmatpush1.bf16.msra.mxu0 %v1904
    %1940 = vmatprep.subr.bf16.mxu0 0
    %1941 = vmatpush1.bf16.msra.mxu0 %v1905
    %1942 = vmatprep.subr.bf16.mxu0 0
    %1943 = vmatpush1.bf16.msra.mxu0 %v1906
    %1944 = vmatprep.subr.bf16.mxu0 0
    %1945 = vmatpush1.bf16.msra.mxu0 %v1907
    %1946 = vmatprep.subr.bf16.mxu0 0
    %1947 = vmatpush1.bf16.msra.mxu0 %v1908
    %1948 = vmatprep.subr.bf16.mxu0 0
    %1949 = vmatpush1.bf16.msra.mxu0 %v1909
    %1950 = vmatprep.subr.bf16.mxu0 0
    %1951 = vmatpush1.bf16.msra.mxu0 %v1910
    %1952 = vmatprep.subr.bf16.mxu0 0
    %1953 = vmatpush1.bf16.msra.mxu0 %v1911
    %1954 = vmatprep.subr.bf16.mxu0 0
    %1955 = vmatpush1.bf16.msra.mxu0 %v1912
    %1956 = vmatprep.subr.bf16.mxu0 0
    %1957 = vmatpush1.bf16.msra.mxu0 %v1913
    %1958 = vmatprep.subr.bf16.mxu0 0
    %1959 = vmatpush1.bf16.msra.mxu0 %v1914
    %1960 = vmatprep.subr.bf16.mxu0 0
    %1961 = vmatpush1.bf16.msra.mxu0 %v1915
    %1962 = vmatprep.subr.bf16.mxu0 0
    %1963 = vmatpush1.bf16.msra.mxu0 %v1916
    %1964 = vmatprep.subr.bf16.mxu0 0
    %1965 = vmatpush1.bf16.msra.mxu0 %v1917
    %1966 = vmatprep.mubr.bf16.mxu0 %v1798
    %1967 = vmatmul.mubr.bf16.gmra.mrb[0].mxu0 %v1797
    %v1968 = vpop.f32.mrb[0].mxu0
    %v1969 = vadd.f32 %v1836, %v1968
    %v1970 = vpop.f32.mrb[0].mxu0
    %v1971 = vpop.f32.mrb[0].mxu0
    %v1972 = vpop.f32.mrb[0].mxu0
    %1973 = vdwg.mxu0
    %v1974 = vmax.f32 %v1969, 0.0
    %v1975 = vpack.c.bf16 %v1974, %v1974
    %v1976 = vld [vmem:[%s7] sm:$0xff]
    %v1977 = vld [vmem:[%s7 + $0x8] sm:$0xf]
    %v1978 = vld [vmem:[%s7 + $0xc] sm:$0xff]
    %v1979 = vld [vmem:[%s7 + $0x14] sm:$0xf]
    %v1980 = vld [vmem:[%s7 + $0x18] sm:$0xff]
    %v1981 = vld [vmem:[%s7 + $0x20] sm:$0xf]
    %v1982 = vld [vmem:[%s7 + $0x24] sm:$0xff]
    %v1983 = vld [vmem:[%s7 + $0x2c] sm:$0xf]
    %v1984 = vld [vmem:[%s7 + $0x30] sm:$0xff]
    %v1985 = vld [vmem:[%s7 + $0x38] sm:$0xf]
    %v1986 = vld [vmem:[%s7 + $0x3c] sm:$0xff]
    %v1987 = vld [vmem:[%s7 + $0x44] sm:$0xf]
    %v1988 = vld [vmem:[%s7 + $0x48] sm:$0xff]
    %v1989 = vld [vmem:[%s7 + $0x50] sm:$0xf]
    %v1990 = vld [vmem:[%s7 + $0x54] sm:$0xff]
    %v1991 = vld [vmem:[%s7 + $0x5c] sm:$0xf]
    %v1992 = vld [vmem:[%s7 + $0x60] sm:$0xff]
    %v1993 = vld [vmem:[%s7 + $0x68] sm:$0xf]
    %v1994 = vld [vmem:[%s7 + $0x6c] sm:$0xff]
    %v1995 = vld [vmem:[%s7 + $0x74] sm:$0xf]
    %v1996 = vld [vmem:[%s7 + $0x78] sm:$0xff]
    %v1997 = vld [vmem:[%s7 + $0x80] sm:$0xf]
    %v1998 = vld [vmem:[%s7 + $0x84] sm:$0xff]
    %v1999 = vld [vmem:[%s7 + $0x8c] sm:$0xf]
    %v2000 = vld [vmem:[%s7 + $0x90] sm:$0xff]
    %v2001 = vld [vmem:[%s7 + $0x98] sm:$0xf]
    %v2002 = vld [vmem:[%s7 + $0x9c] sm:$0xff]
    %v2003 = vld [vmem:[%s7 + $0xa4] sm:$0xf]
    %v2004 = vld [vmem:[%s7 + $0xa8] sm:$0xff]
    %v2005 = vld [vmem:[%s7 + $0xb0] sm:$0xf]
    %v2006 = vld [vmem:[%s7 + $0xb4] sm:$0xff]
    %v2007 = vld [vmem:[%s7 + $0xbc] sm:$0xf]
    %v2008 = vld [vmem:[%s8] sm:$0x7]
    %v2010 = vlaneseq
    %v2011 = vshrl.u32 %v2010, 7
    %v2012 = vsub.s32 0, %v2011
    %v2013 = vrot.slane %v2008, %v2012
    %v2014 = vlaneseq
    %v2015 = vshrl.u32 %v2014, 7
    %v2016 = vsub.s32 1, %v2015
    %v2017 = vrot.slane %v2008, %v2016
    %v2018 = vlaneseq
    %v2019 = vshrl.u32 %v2018, 7
    %v2020 = vsub.s32 2, %v2019
    %v2021 = vrot.slane %v2008, %v2020
    %v2057 = vunpack.c.l.b16 %v1976
    %v2058 = vunpack.c.h.b16 %v1976
    %v2059 = vunpack.c.l.b16 %v1977
    %v2060 = vunpack.c.l.b16 %v1978
    %v2061 = vunpack.c.h.b16 %v1978
    %v2062 = vunpack.c.l.b16 %v1979
    %v2063 = vunpack.c.l.b16 %v1980
    %v2064 = vunpack.c.h.b16 %v1980
    %v2065 = vunpack.c.l.b16 %v1981
    %v2066 = vunpack.c.l.b16 %v1982
    %v2067 = vunpack.c.h.b16 %v1982
    %v2068 = vunpack.c.l.b16 %v1983
    %v2069 = vunpack.c.l.b16 %v1984
    %v2070 = vunpack.c.h.b16 %v1984
    %v2071 = vunpack.c.l.b16 %v1985
    %v2072 = vunpack.c.l.b16 %v1986
    %v2073 = vunpack.c.h.b16 %v1986
    %v2074 = vunpack.c.l.b16 %v1987
    %v2075 = vunpack.c.l.b16 %v1988
    %v2076 = vunpack.c.h.b16 %v1988
    %v2077 = vunpack.c.l.b16 %v1989
    %v2078 = vunpack.c.l.b16 %v1990
    %v2079 = vunpack.c.h.b16 %v1990
    %v2080 = vunpack.c.l.b16 %v1991
    %v2081 = vunpack.c.l.b16 %v1992
    %v2082 = vunpack.c.h.b16 %v1992
    %v2083 = vunpack.c.l.b16 %v1993
    %v2084 = vunpack.c.l.b16 %v1994
    %v2085 = vunpack.c.h.b16 %v1994
    %v2086 = vunpack.c.l.b16 %v1995
    %v2087 = vunpack.c.l.b16 %v1996
    %v2088 = vunpack.c.h.b16 %v1996
    %v2089 = vunpack.c.l.b16 %v1997
    %v2090 = vunpack.c.l.b16 %v1998
    %v2091 = vunpack.c.h.b16 %v1998
    %v2092 = vunpack.c.l.b16 %v1999
    %v2093 = vunpack.c.l.b16 %v2000
    %v2094 = vunpack.c.h.b16 %v2000
    %v2095 = vunpack.c.l.b16 %v2001
    %v2096 = vunpack.c.l.b16 %v2002
    %v2097 = vunpack.c.h.b16 %v2002
    %v2098 = vunpack.c.l.b16 %v2003
    %v2099 = vunpack.c.l.b16 %v2004
    %v2100 = vunpack.c.h.b16 %v2004
    %v2101 = vunpack.c.l.b16 %v2005
    %v2102 = vunpack.c.l.b16 %v2006
    %v2103 = vunpack.c.h.b16 %v2006
    %v2104 = vunpack.c.l.b16 %v2007
    %v2105 = vpack.c.b16 %v2060, %v2057
    %v2106 = vpack.c.b16 %v2061, %v2058
    %v2107 = vpack.c.b16 %v2062, %v2059
    %v2108 = vpack.c.b16 %v2066, %v2063
    %v2109 = vpack.c.b16 %v2067, %v2064
    %v2110 = vpack.c.b16 %v2068, %v2065
    %v2111 = vpack.c.b16 %v2072, %v2069
    %v2112 = vpack.c.b16 %v2073, %v2070
    %v2113 = vpack.c.b16 %v2074, %v2071
    %v2114 = vpack.c.b16 %v2078, %v2075
    %v2115 = vpack.c.b16 %v2079, %v2076
    %v2116 = vpack.c.b16 %v2080, %v2077
    %v2117 = vpack.c.b16 %v2084, %v2081
    %v2118 = vpack.c.b16 %v2085, %v2082
    %v2119 = vpack.c.b16 %v2086, %v2083
    %v2120 = vpack.c.b16 %v2090, %v2087
    %v2121 = vpack.c.b16 %v2091, %v2088
    %v2122 = vpack.c.b16 %v2092, %v2089
    %v2123 = vpack.c.b16 %v2096, %v2093
    %v2124 = vpack.c.b16 %v2097, %v2094
    %v2125 = vpack.c.b16 %v2098, %v2095
    %v2126 = vpack.c.b16 %v2102, %v2099
    %v2127 = vpack.c.b16 %v2103, %v2100
    %v2128 = vpack.c.b16 %v2104, %v2101
    %2153 = vmatprep.subr.bf16.mxu0 %v2106
    %2154 = vmatpush1.bf16.msra.mxu0 %v2105
    %2155 = vmatprep.subr.bf16.mxu0 %v2109
    %2156 = vmatpush1.bf16.msra.mxu0 %v2108
    %2157 = vmatprep.subr.bf16.mxu0 %v2112
    %2158 = vmatpush1.bf16.msra.mxu0 %v2111
    %2159 = vmatprep.subr.bf16.mxu0 %v2115
    %2160 = vmatpush1.bf16.msra.mxu0 %v2114
    %2161 = vmatprep.subr.bf16.mxu0 %v2118
    %2162 = vmatpush1.bf16.msra.mxu0 %v2117
    %2163 = vmatprep.subr.bf16.mxu0 %v2121
    %2164 = vmatpush1.bf16.msra.mxu0 %v2120
    %2165 = vmatprep.subr.bf16.mxu0 %v2124
    %2166 = vmatpush1.bf16.msra.mxu0 %v2123
    %2167 = vmatprep.subr.bf16.mxu0 %v2127
    %2168 = vmatpush1.bf16.msra.mxu0 %v2126
    %2169 = vmatprep.subr.bf16.mxu0 0
    %2170 = vmatpush1.bf16.msra.mxu0 0
    %2171 = vmatprep.subr.bf16.mxu0 0
    %2172 = vmatpush1.bf16.msra.mxu0 0
    %2173 = vmatprep.subr.bf16.mxu0 0
    %2174 = vmatpush1.bf16.msra.mxu0 0
    %2175 = vmatprep.subr.bf16.mxu0 0
    %2176 = vmatpush1.bf16.msra.mxu0 0
    %2177 = vmatprep.subr.bf16.mxu0 0
    %2178 = vmatpush1.bf16.msra.mxu0 0
    %2179 = vmatprep.subr.bf16.mxu0 0
    %2180 = vmatpush1.bf16.msra.mxu0 0
    %2181 = vmatprep.subr.bf16.mxu0 0
    %2182 = vmatpush1.bf16.msra.mxu0 0
    %2183 = vmatprep.subr.bf16.mxu0 0
    %2184 = vmatpush1.bf16.msra.mxu0 0
    %2185 = vmatprep.mubr.bf16.mxu0 0
    %2186 = vmatmul.mubr.bf16.gmra.mrb[0].mxu0 %v1975
    %v2187 = vpop.f32.mrb[0].mxu0
    %v2188 = vadd.f32 %v2013, %v2187
    %v2189 = vpop.f32.mrb[0].mxu0
    %v2190 = vadd.f32 %v2017, %v2189
    %v2191 = vpop.f32.mrb[0].mxu0
    %v2192 = vpop.f32.mrb[0].mxu0
    %2193 = vdwg.mxu0
    %2194 = vmatprep.subr.bf16.mxu0 0
    %2195 = vmatpush1.bf16.msra.mxu0 %v2107
    %2196 = vmatprep.subr.bf16.mxu0 0
    %2197 = vmatpush1.bf16.msra.mxu0 %v2110
    %2198 = vmatprep.subr.bf16.mxu0 0
    %2199 = vmatpush1.bf16.msra.mxu0 %v2113
    %2200 = vmatprep.subr.bf16.mxu0 0
    %2201 = vmatpush1.bf16.msra.mxu0 %v2116
    %2202 = vmatprep.subr.bf16.mxu0 0
    %2203 = vmatpush1.bf16.msra.mxu0 %v2119
    %2204 = vmatprep.subr.bf16.mxu0 0
    %2205 = vmatpush1.bf16.msra.mxu0 %v2122
    %2206 = vmatprep.subr.bf16.mxu0 0
    %2207 = vmatpush1.bf16.msra.mxu0 %v2125
    %2208 = vmatprep.subr.bf16.mxu0 0
    %2209 = vmatpush1.bf16.msra.mxu0 %v2128
    %2210 = vmatprep.subr.bf16.mxu0 0
    %2211 = vmatpush1.bf16.msra.mxu0 0
    %2212 = vmatprep.subr.bf16.mxu0 0
    %2213 = vmatpush1.bf16.msra.mxu0 0
    %2214 = vmatprep.subr.bf16.mxu0 0
    %2215 = vmatpush1.bf16.msra.mxu0 0
    %2216 = vmatprep.subr.bf16.mxu0 0
    %2217 = vmatpush1.bf16.msra.mxu0 0
    %2218 = vmatprep.subr.bf16.mxu0 0
    %2219 = vmatpush1.bf16.msra.mxu0 0
    %2220 = vmatprep.subr.bf16.mxu0 0
    %2221 = vmatpush1.bf16.msra.mxu0 0
    %2222 = vmatprep.subr.bf16.mxu0 0
    %2223 = vmatpush1.bf16.msra.mxu0 0
    %2224 = vmatprep.subr.bf16.mxu0 0
    %2225 = vmatpush1.bf16.msra.mxu0 0
    %2226 = vmatprep.mubr.bf16.mxu0 0
    %2227 = vmatmul.mubr.bf16.gmra.mrb[0].mxu0 %v1975
    %v2228 = vpop.f32.mrb[0].mxu0
    %v2229 = vadd.f32 %v2021, %v2228
    %v2230 = vpop.f32.mrb[0].mxu0
    %v2231 = vpop.f32.mrb[0].mxu0
    %v2232 = vpop.f32.mrb[0].mxu0
    %2233 = vdwg.mxu0
    %v2234 = vmax.f32 %v2188, 0.0
    %v2235 = vmax.f32 %v2190, 0.0
    %v2236 = vmax.f32 %v2229, 0.0
    %v2240 = vcombine.low %v2234, %v2235
    %v2242 = vunpack.c.l.s4 1983009808
    %v2243 = vunpack.c.0.s8 %v2242
    %v2244 = vlaneseq
    %v2245 = vshrl.u32 %v2244, 7
    %v2246 = vsub.s32 %v2243, %v2245
    %v2247 = vrot.slane %v2240, %v2246
    %v2249 = vunpack.c.l.s4 1983009808
    %v2250 = vunpack.c.0.s8 %v2249
    %v2251 = vlaneseq
    %v2252 = vshrl.u32 %v2251, 7
    %v2253 = vsub.s32 %v2250, %v2252
    %v2254 = vrot.slane %v2236, %v2253
    %v2255 = vcombine.low %v2247, %v2254
    %vm2257 = vcmask 1043458
    %vm2258 = vmor %vm2257, %vm1050
    %vm2259 = vcmask 504836
    %vm2260 = vmor %vm2259, %vm2258
    %2261 = vst.msk [vmem:[#allocation7] sm:$0x3f] %vm2260, %v2255
    // Predicated region
    $region46: #{tpu_custom_call.1} parent=1 // pred_check
      _
    $region47: #{tpu_custom_call.1} parent=1 // pred_check_branch
      %2263 = sbr.rel (0) target = $region49
    $region48: #{tpu_custom_call.1} parent=1 // pred_region
      %s2265 = ssub.s32 96, 96
      %2266 = vsyncadd [#allocation4], %s2265
      %s2268 = sshll.u32 [#allocation7], 4
      %s2269 = int_to_ptr.vmem [resolvable:$true] %s2268
      %2271 = dma.vmem_to_hbm [thread:$0]  %s2269, 96, %s9, [#allocation4]
    $region49: #{tpu_custom_call.1} parent=1 // pred_fallthru
      _
    // Predicated region
    $region50: #{tpu_custom_call.1} parent=1 // pred_check
      _
    $region51: #{tpu_custom_call.1} parent=1 // pred_check_branch
      %2273 = sbr.rel (0) target = $region53
    $region52: #{tpu_custom_call.1} parent=1 // pred_region
      %2274 = dma.done [#allocation4], 96
    $region53: #{tpu_custom_call.1} parent=1 // pred_fallthru
      _
    %2275 = vsyncpa [#allocation3], 1
    %2276 = vsyncpa [#allocation6], 1
    %2277 = vsyncpa [#allocation4], 1

</llo_original>
